<compile_context>
chip_gen: v7x
topology: tpu7x:2x2x1
jax: 0.10.0
libtpu: 0.0.40
codegen_flags: <defaults>
</compile_context>

<pallas_src>
import functools

import jax
import jax.numpy as jnp
from jax.experimental import pallas as pl
from jax.experimental.pallas import tpu as pltpu


def _layer_norm(x, gamma, beta, eps=1e-6):
    # AllenNLP LayerNorm: gamma * (x - mean) / (std + eps) + beta (population std)
    mean = jnp.mean(x, axis=-1, keepdims=True)
    var = jnp.mean((x - mean) ** 2, axis=-1, keepdims=True)
    std = jnp.sqrt(var)
    return gamma * (x - mean) / (std + eps) + beta


def transformer_block_kernel(
    x_ref, mask_ref,
    w1_ref, b1_ref, w2_ref, b2_ref,
    gff_ref, bff_ref,
    wc_ref, bc_ref, wo_ref, bo_ref,
    gln_ref, bln_ref,
    out_ref,
    vals_ref,                     # VMEM scratch (BB, T, V) f32 for head outputs
    *, num_heads, attention_dim, values_dim, inv_scale, compute_dtype,
):
    BB, T, D = x_ref.shape
    A = attention_dim
    V = values_dim
    H = num_heads
    dh = A // H
    dv = V // H

    x = x_ref[...].reshape(BB * T, D)          # (BB*T, D) f32
    mask = mask_ref[...]                       # (BB, T)   f32
    mask_b = mask[:, None, :]                  # (BB, 1, T)

    # ---------------- FeedForward: relu(x W1 + b1) W2 + b2 (bf16 MXU) --------
    h = jnp.dot(x.astype(compute_dtype), w1_ref[...],
                preferred_element_type=jnp.float32) + b1_ref[...]
    h = jnp.maximum(h, 0.0)
    ff = jnp.dot(h.astype(compute_dtype), w2_ref[...],
                 preferred_element_type=jnp.float32) + b2_ref[...]

    # residual + LayerNorm (f32)
    ff = _layer_norm(ff + x, gff_ref[...], bff_ref[...])       # (BB*T, D)

    # ---------------- MultiHeadSelfAttention ----------------
    # combined projection -> [queries | keys | values]  (bf16 MXU, f32 acc)
    combined = jnp.dot(ff.astype(compute_dtype), wc_ref[...],
                       preferred_element_type=jnp.float32) + bc_ref[...]
    comb3 = combined.reshape(BB, T, 2 * A + V)

    q = comb3[:, :, :A] * inv_scale            # hoisted scaling, applied once
    k = comb3[:, :, A:2 * A]
    v = comb3[:, :, 2 * A:2 * A + V]

    for hd in range(H):
        qh = q[:, :, hd * dh:(hd + 1) * dh]    # (BB, T, dh)
        kh = k[:, :, hd * dh:(hd + 1) * dh]    # (BB, T, dh)
        vh = v[:, :, hd * dv:(hd + 1) * dv]    # (BB, T, dv)

        # batched over the BB sequences: 'bqd,bkd->bqk'
        scores = jax.lax.dot_general(
            qh, kh,
            dimension_numbers=(((2,), (2,)), ((0,), (0,))),
            preferred_element_type=jnp.float32)                 # (BB, T, T)

        # AllenNLP masked_softmax (fused normalization):
        #   softmax(scores * mask) re-masked and renormalized
        logits = scores * mask_b
        logits = logits - jnp.max(logits, axis=-1, keepdims=True)
        p = jnp.exp(logits) * mask_b
        denom = jnp.sum(p, axis=-1, keepdims=True) + 1e-13
        p = p * pl.reciprocal(denom, approx=True)

        # context: 'bqk,bkd->bqd'
        ctx = jax.lax.dot_general(
            p, vh,
            dimension_numbers=(((2,), (1,)), ((0,), (0,))),
            preferred_element_type=jnp.float32)                 # (BB, T, dv)

        vals_ref[:, :, hd * dv:(hd + 1) * dv] = ctx

    values_out = vals_ref[...].reshape(BB * T, V)

    att = jnp.dot(values_out.astype(compute_dtype), wo_ref[...],
                  preferred_element_type=jnp.float32) + bo_ref[...]

    # residual + LayerNorm (f32)
    out = _layer_norm(att + ff, gln_ref[...], bln_ref[...])
    out_ref[...] = out.reshape(BB, T, D).astype(out_ref.dtype)


def transformer_block(x, mask, params, *, num_heads, attention_dim, values_dim,
                      batch_block=None, compute_dtype=jnp.bfloat16):
    """x: (B, T, D) f32, mask: (B, T) bool. Returns (B, T, D) f32."""
    B, T, D = x.shape
    scale = float((D // num_heads) ** 0.5)
    mask_f = mask.astype(jnp.float32)

    (w1, b1, w2, b2, gff, bff, wc, bc, wo, bo, gln, bln) = params
    # Weight matrices in compute dtype (bf16): higher MXU rate + halved DMA.
    # Biases / LayerNorm params stay f32 (added to f32 accumulators).
    w1c, w2c, wcc, woc = (w.astype(compute_dtype) for w in (w1, w2, wc, wo))

    if batch_block is None:
        # Fold sequences so each grid step sees ~256 matmul rows (one full MXU
        # pass on v6e/v7x, 2x128 passes on v5e).  Everything here is tiny, so
        # VMEM (even v7x's 64 MiB) is not a constraint at these sizes.
        target_rows = 256
        batch_block = 1
        for bb in range(1, B + 1):
            if B % bb == 0 and bb * T <= target_rows:
                batch_block = bb
        # v7x has 2 TensorCores: prefer a grid of length >= 2 when we can keep
        # M >= 128 after splitting.
        while (B // batch_block < 2 and batch_block % 2 == 0
               and (batch_block // 2) * T >= 128):
            batch_block //= 2
    BB = batch_block
    assert B % BB == 0, "batch_block must divide the batch size"
    grid = (B // BB,)

    def full_spec(a):
        shape = a.shape
        return pl.BlockSpec(shape, lambda b: (0,) * len(shape))

    kernel = functools.partial(
        transformer_block_kernel,
        num_heads=num_heads,
        attention_dim=attention_dim,
        values_dim=values_dim,
        inv_scale=1.0 / scale,
        compute_dtype=compute_dtype,
    )

    return pl.pallas_call(
        kernel,
        out_shape=jax.ShapeDtypeStruct((B, T, D), jnp.float32),
        grid_spec=pltpu.PrefetchScalarGridSpec(
            num_scalar_prefetch=0,
            grid=grid,
            in_specs=[
                pl.BlockSpec((BB, T, D), lambda b: (b, 0, 0)),   # x
                pl.BlockSpec((BB, T), lambda b: (b, 0)),          # mask
                # weights/biases: whole-array blocks with constant index maps
                # (fetched once, resident across grid steps)
                full_spec(w1c), full_spec(b1),
                full_spec(w2c), full_spec(b2),
                full_spec(gff), full_spec(bff),
                full_spec(wcc), full_spec(bc),
                full_spec(woc), full_spec(bo),
                full_spec(gln), full_spec(bln),
            ],
            out_specs=pl.BlockSpec((BB, T, D), lambda b: (b, 0, 0)),
            scratch_shapes=[pltpu.VMEM((BB, T, values_dim), jnp.float32)],
        ),
        compiler_params=pltpu.CompilerParams(
            dimension_semantics=("parallel",)),
    )(x, mask_f, w1c, b1, w2c, b2, gff, bff, wcc, bc, woc, bo, gln, bln)


def _reference(x, mask, params, *, num_heads, attention_dim, values_dim):
    """Pure-JAX f32 reference of the module's math (for a sanity check)."""
    (w1, b1, w2, b2, gff, bff, wc, bc, wo, bo, gln, bln) = params
    B, T, D = x.shape
    scale = float((D // num_heads) ** 0.5)
    m = mask.astype(jnp.float32)[:, None, :]                      # (B,1,T)

    def ln(t, g, be, eps=1e-6):
        mu = jnp.mean(t, -1, keepdims=True)
        std = jnp.sqrt(jnp.mean((t - mu) ** 2, -1, keepdims=True))
        return g * (t - mu) / (std + eps) + be

    h = jnp.maximum(x @ w1 + b1, 0.0)
    ff = ln(h @ w2 + b2 + x, gff, bff)
    comb = ff @ wc + bc
    A, V = attention_dim, values_dim
    q, k, v = comb[..., :A], comb[..., A:2 * A], comb[..., 2 * A:]
    dh, dv = A // num_heads, V // num_heads
    outs = []
    for hd in range(num_heads):
        qh, kh, vh = (q[..., hd * dh:(hd + 1) * dh],
                      k[..., hd * dh:(hd + 1) * dh],
                      v[..., hd * dv:(hd + 1) * dv])
        s = jnp.einsum("btd,bsd->bts", qh / scale, kh)
        p = jax.nn.softmax(s * m, axis=-1) * m
        p = p / (jnp.sum(p, -1, keepdims=True) + 1e-13)
        outs.append(jnp.einsum("bts,bsd->btd", p, vh))
    att = jnp.concatenate(outs, -1) @ wo + bo
    return ln(att + ff, gln, bln)


if __name__ == "__main__":
    # Small shapes consistent with the module's forward
    B, T = 2, 8                      # batch, timesteps
    input_dim, hidden_dim = 32, 64
    n_heads, projection_dim = 4, 32  # attention_dim = values_dim = projection_dim

    key = jax.random.PRNGKey(0)
    ks = jax.random.split(key, 10)

    def init(k, shape, fan_in):
        bound = 1.0 / (fan_in ** 0.5)
        return jax.random.uniform(k, shape, jnp.float32, -bound, bound)

    # FeedForward: Linear(D->HID), Linear(HID->D)   (weights stored as (in, out))
    w1 = init(ks[0], (input_dim, hidden_dim), input_dim)
    b1 = init(ks[1], (1, hidden_dim), input_dim)
    w2 = init(ks[2], (hidden_dim, input_dim), hidden_dim)
    b2 = init(ks[3], (1, input_dim), hidden_dim)
    # ff LayerNorm
    gff = jnp.ones((1, input_dim), jnp.float32)
    bff = jnp.zeros((1, input_dim), jnp.float32)
    # Attention: combined proj D -> 2*A + V, output proj V -> D
    wc = init(ks[4], (input_dim, 2 * projection_dim + projection_dim), input_dim)
    bc = init(ks[5], (1, 2 * projection_dim + projection_dim), input_dim)
    wo = init(ks[6], (projection_dim, input_dim), projection_dim)
    bo = init(ks[7], (1, input_dim), projection_dim)
    # final LayerNorm
    gln = jnp.ones((1, input_dim), jnp.float32)
    bln = jnp.zeros((1, input_dim), jnp.float32)

    params = (w1, b1, w2, b2, gff, bff, wc, bc, wo, bo, gln, bln)

    x = jax.random.normal(ks[8], (B, T, input_dim), jnp.float32)
    # bool mask: second sequence has 2 padded positions at the end
    mask = jnp.array([[True] * T, [True] * (T - 2) + [False] * 2])

    out = transformer_block(
        x, mask, params,
        num_heads=n_heads,
        attention_dim=projection_dim,
        values_dim=projection_dim,
    )
    out = jax.block_until_ready(out)

    ref = _reference(
        x, mask, params,
        num_heads=n_heads,
        attention_dim=projection_dim,
        values_dim=projection_dim,
    )
    assert out.shape == (B, T, input_dim)
    # Tolerance covers bf16 operands in the dense matmuls (f32 accumulation,
    # f32 LayerNorm/softmax); attention-internal dots stay f32.
    assert jnp.allclose(out, ref, rtol=3e-2, atol=3e-2), "mismatch vs reference"

    print("KERNEL_OK")
</pallas_src>

<mosaic_0001>
module attributes {stable_mosaic.version = 11 : i64} {
  func.func @transformer_block_kernel(%arg0: i32, %arg1: memref<2x8x32xf32, #tpu.memory_space<vmem>>, %arg2: memref<2x8xf32, #tpu.memory_space<vmem>>, %arg3: memref<32x64xbf16, #tpu.memory_space<vmem>>, %arg4: memref<1x64xf32, #tpu.memory_space<vmem>>, %arg5: memref<64x32xbf16, #tpu.memory_space<vmem>>, %arg6: memref<1x32xf32, #tpu.memory_space<vmem>>, %arg7: memref<1x32xf32, #tpu.memory_space<vmem>>, %arg8: memref<1x32xf32, #tpu.memory_space<vmem>>, %arg9: memref<32x96xbf16, #tpu.memory_space<vmem>>, %arg10: memref<1x96xf32, #tpu.memory_space<vmem>>, %arg11: memref<32x32xbf16, #tpu.memory_space<vmem>>, %arg12: memref<1x32xf32, #tpu.memory_space<vmem>>, %arg13: memref<1x32xf32, #tpu.memory_space<vmem>>, %arg14: memref<1x32xf32, #tpu.memory_space<vmem>>, %arg15: memref<2x8x32xf32, #tpu.memory_space<vmem>>, %arg16: memref<2x8x32xf32, #tpu.memory_space<vmem>>) attributes {dimension_semantics = [#tpu.dimension_semantics<parallel>], iteration_bounds = array<i64: 1>, scalar_prefetch = 0 : i64, scratch_operands = 1 : i64, tpu.core_type = #tpu.core_type<tc>, window_params = [{transform_indices = @transform_0, window_bounds = array<i64: 2, 8, 32>}, {transform_indices = @transform_1, window_bounds = array<i64: 2, 8>}, {pipeline_mode = #tpu.pipeline_mode<synchronous>, transform_indices = @transform_2, window_bounds = array<i64: 32, 64>}, {pipeline_mode = #tpu.pipeline_mode<synchronous>, transform_indices = @transform_3, window_bounds = array<i64: 1, 64>}, {pipeline_mode = #tpu.pipeline_mode<synchronous>, transform_indices = @transform_4, window_bounds = array<i64: 64, 32>}, {pipeline_mode = #tpu.pipeline_mode<synchronous>, transform_indices = @transform_5, window_bounds = array<i64: 1, 32>}, {pipeline_mode = #tpu.pipeline_mode<synchronous>, transform_indices = @transform_6, window_bounds = array<i64: 1, 32>}, {pipeline_mode = #tpu.pipeline_mode<synchronous>, transform_indices = @transform_7, window_bounds = array<i64: 1, 32>}, {pipeline_mode = #tpu.pipeline_mode<synchronous>, transform_indices = @transform_8, window_bounds = array<i64: 32, 96>}, {pipeline_mode = #tpu.pipeline_mode<synchronous>, transform_indices = @transform_9, window_bounds = array<i64: 1, 96>}, {pipeline_mode = #tpu.pipeline_mode<synchronous>, transform_indices = @transform_10, window_bounds = array<i64: 32, 32>}, {pipeline_mode = #tpu.pipeline_mode<synchronous>, transform_indices = @transform_11, window_bounds = array<i64: 1, 32>}, {pipeline_mode = #tpu.pipeline_mode<synchronous>, transform_indices = @transform_12, window_bounds = array<i64: 1, 32>}, {pipeline_mode = #tpu.pipeline_mode<synchronous>, transform_indices = @transform_13, window_bounds = array<i64: 1, 32>}, {transform_indices = @transform_14, window_bounds = array<i64: 2, 8, 32>}]} {
    %c0 = arith.constant 0 : index
    %c0_0 = arith.constant 0 : index
    %c0_1 = arith.constant 0 : index
    %0 = vector.load %arg1[%c0, %c0_0, %c0_1] : memref<2x8x32xf32, #tpu.memory_space<vmem>>, vector<2x8x32xf32>
    %1 = vector.shape_cast %0 : vector<2x8x32xf32> to vector<16x32xf32>
    %c0_2 = arith.constant 0 : index
    %c0_3 = arith.constant 0 : index
    %2 = vector.load %arg2[%c0_2, %c0_3] : memref<2x8xf32, #tpu.memory_space<vmem>>, vector<2x8xf32>
    %3 = vector.shape_cast %2 : vector<2x8xf32> to vector<2x1x8xf32>
    %4 = arith.truncf %1 : vector<16x32xf32> to vector<16x32xbf16>
    %c0_4 = arith.constant 0 : index
    %c0_5 = arith.constant 0 : index
    %5 = vector.load %arg3[%c0_4, %c0_5] : memref<32x64xbf16, #tpu.memory_space<vmem>>, vector<32x64xbf16>
    %cst = arith.constant dense<0.000000e+00> : vector<16x64xf32>
    %6 = tpu.matmul %4, %5, %cst {dimension_numbers = #tpu.dot_dimension_numbers<[1], [0], [0], [1], [0, 0, 1, 1], [], []>} : vector<16x32xbf16>, vector<32x64xbf16>, vector<16x64xf32> -> vector<16x64xf32>
    %c0_6 = arith.constant 0 : index
    %c0_7 = arith.constant 0 : index
    %7 = vector.load %arg4[%c0_6, %c0_7] : memref<1x64xf32, #tpu.memory_space<vmem>>, vector<1x64xf32>
    %8 = vector.broadcast %7 : vector<1x64xf32> to vector<16x64xf32>
    %9 = arith.addf %6, %8 : vector<16x64xf32>
    %cst_8 = arith.constant 0.000000e+00 : f32
    %10 = vector.broadcast %cst_8 : f32 to vector<16x64xf32>
    %11 = arith.maximumf %9, %10 : vector<16x64xf32>
    %12 = arith.truncf %11 : vector<16x64xf32> to vector<16x64xbf16>
    %c0_9 = arith.constant 0 : index
    %c0_10 = arith.constant 0 : index
    %13 = vector.load %arg5[%c0_9, %c0_10] : memref<64x32xbf16, #tpu.memory_space<vmem>>, vector<64x32xbf16>
    %cst_11 = arith.constant dense<0.000000e+00> : vector<16x32xf32>
    %14 = tpu.matmul %12, %13, %cst_11 {dimension_numbers = #tpu.dot_dimension_numbers<[1], [0], [0], [1], [0, 0, 1, 1], [], []>} : vector<16x64xbf16>, vector<64x32xbf16>, vector<16x32xf32> -> vector<16x32xf32>
    %c0_12 = arith.constant 0 : index
    %c0_13 = arith.constant 0 : index
    %15 = vector.load %arg6[%c0_12, %c0_13] : memref<1x32xf32, #tpu.memory_space<vmem>>, vector<1x32xf32>
    %16 = vector.broadcast %15 : vector<1x32xf32> to vector<16x32xf32>
    %17 = arith.addf %14, %16 : vector<16x32xf32>
    %18 = arith.addf %17, %1 : vector<16x32xf32>
    %c0_14 = arith.constant 0 : index
    %c0_15 = arith.constant 0 : index
    %19 = vector.load %arg7[%c0_14, %c0_15] : memref<1x32xf32, #tpu.memory_space<vmem>>, vector<1x32xf32>
    %c0_16 = arith.constant 0 : index
    %c0_17 = arith.constant 0 : index
    %20 = vector.load %arg8[%c0_16, %c0_17] : memref<1x32xf32, #tpu.memory_space<vmem>>, vector<1x32xf32>
    %cst_18 = arith.constant dense<0.000000e+00> : vector<16xf32>
    %21 = vector.multi_reduction <add>, %18, %cst_18 [1] : vector<16x32xf32> to vector<16xf32>
    %22 = vector.shape_cast %21 : vector<16xf32> to vector<16x1xf32>
    %cst_19 = arith.constant 3.200000e+01 : f32
    %23 = vector.broadcast %cst_19 : f32 to vector<16x1xf32>
    %24 = arith.divf %22, %23 : vector<16x1xf32>
    %25 = vector.broadcast %24 : vector<16x1xf32> to vector<16x32xf32>
    %26 = arith.subf %18, %25 : vector<16x32xf32>
    %27 = arith.mulf %26, %26 : vector<16x32xf32>
    %cst_20 = arith.constant dense<0.000000e+00> : vector<16xf32>
    %28 = vector.multi_reduction <add>, %27, %cst_20 [1] : vector<16x32xf32> to vector<16xf32>
    %29 = vector.shape_cast %28 : vector<16xf32> to vector<16x1xf32>
    %cst_21 = arith.constant 3.200000e+01 : f32
    %30 = vector.broadcast %cst_21 : f32 to vector<16x1xf32>
    %31 = arith.divf %29, %30 : vector<16x1xf32>
    %32 = math.sqrt %31 : vector<16x1xf32>
    %33 = vector.broadcast %24 : vector<16x1xf32> to vector<16x32xf32>
    %34 = arith.subf %18, %33 : vector<16x32xf32>
    %35 = vector.broadcast %19 : vector<1x32xf32> to vector<16x32xf32>
    %36 = arith.mulf %35, %34 : vector<16x32xf32>
    %cst_22 = arith.constant 9.99999997E-7 : f32
    %37 = vector.broadcast %cst_22 : f32 to vector<16x1xf32>
    %38 = arith.addf %32, %37 : vector<16x1xf32>
    %39 = vector.broadcast %38 : vector<16x1xf32> to vector<16x32xf32>
    %40 = arith.divf %36, %39 : vector<16x32xf32>
    %41 = vector.broadcast %20 : vector<1x32xf32> to vector<16x32xf32>
    %42 = arith.addf %40, %41 : vector<16x32xf32>
    %43 = arith.truncf %42 : vector<16x32xf32> to vector<16x32xbf16>
    %c0_23 = arith.constant 0 : index
    %c0_24 = arith.constant 0 : index
    %44 = vector.load %arg9[%c0_23, %c0_24] : memref<32x96xbf16, #tpu.memory_space<vmem>>, vector<32x96xbf16>
    %cst_25 = arith.constant dense<0.000000e+00> : vector<16x96xf32>
    %45 = tpu.matmul %43, %44, %cst_25 {dimension_numbers = #tpu.dot_dimension_numbers<[1], [0], [0], [1], [0, 0, 1, 1], [], []>} : vector<16x32xbf16>, vector<32x96xbf16>, vector<16x96xf32> -> vector<16x96xf32>
    %c0_26 = arith.constant 0 : index
    %c0_27 = arith.constant 0 : index
    %46 = vector.load %arg10[%c0_26, %c0_27] : memref<1x96xf32, #tpu.memory_space<vmem>>, vector<1x96xf32>
    %47 = vector.broadcast %46 : vector<1x96xf32> to vector<16x96xf32>
    %48 = arith.addf %45, %47 : vector<16x96xf32>
    %49 = vector.shape_cast %48 : vector<16x96xf32> to vector<2x8x96xf32>
    %50 = vector.extract_strided_slice %49 {offsets = [0, 0, 0], sizes = [2, 8, 32], strides = [1, 1, 1]} : vector<2x8x96xf32> to vector<2x8x32xf32>
    %cst_28 = arith.constant 0.353553385 : f32
    %51 = vector.broadcast %cst_28 : f32 to vector<2x8x32xf32>
    %52 = arith.mulf %50, %51 : vector<2x8x32xf32>
    %53 = vector.extract_strided_slice %49 {offsets = [0, 0, 32], sizes = [2, 8, 32], strides = [1, 1, 1]} : vector<2x8x96xf32> to vector<2x8x32xf32>
    %54 = vector.extract_strided_slice %49 {offsets = [0, 0, 64], sizes = [2, 8, 32], strides = [1, 1, 1]} : vector<2x8x96xf32> to vector<2x8x32xf32>
    %55 = vector.extract_strided_slice %52 {offsets = [0, 0, 0], sizes = [2, 8, 8], strides = [1, 1, 1]} : vector<2x8x32xf32> to vector<2x8x8xf32>
    %56 = vector.extract_strided_slice %53 {offsets = [0, 0, 0], sizes = [2, 8, 8], strides = [1, 1, 1]} : vector<2x8x32xf32> to vector<2x8x8xf32>
    %57 = vector.extract_strided_slice %54 {offsets = [0, 0, 0], sizes = [2, 8, 8], strides = [1, 1, 1]} : vector<2x8x32xf32> to vector<2x8x8xf32>
    %cst_29 = arith.constant dense<0.000000e+00> : vector<2x8x8xf32>
    %58 = tpu.matmul %55, %56, %cst_29 {dimension_numbers = #tpu.dot_dimension_numbers<[2], [2], [1], [1], [0, 0, 0, 1, 1, 1], [0], [0]>} : vector<2x8x8xf32>, vector<2x8x8xf32>, vector<2x8x8xf32> -> vector<2x8x8xf32>
    %59 = vector.broadcast %3 : vector<2x1x8xf32> to vector<2x8x8xf32>
    %60 = arith.mulf %58, %59 : vector<2x8x8xf32>
    %cst_30 = arith.constant dense<0xFF800000> : vector<2x8xf32>
    %61 = vector.multi_reduction <maximumf>, %60, %cst_30 [2] : vector<2x8x8xf32> to vector<2x8xf32>
    %62 = vector.shape_cast %61 : vector<2x8xf32> to vector<2x8x1xf32>
    %63 = vector.broadcast %62 : vector<2x8x1xf32> to vector<2x8x8xf32>
    %64 = arith.subf %60, %63 : vector<2x8x8xf32>
    %65 = math.exp %64 : vector<2x8x8xf32>
    %66 = vector.broadcast %3 : vector<2x1x8xf32> to vector<2x8x8xf32>
    %67 = arith.mulf %65, %66 : vector<2x8x8xf32>
    %cst_31 = arith.constant dense<0.000000e+00> : vector<2x8xf32>
    %68 = vector.multi_reduction <add>, %67, %cst_31 [2] : vector<2x8x8xf32> to vector<2x8xf32>
    %69 = vector.shape_cast %68 : vector<2x8xf32> to vector<2x8x1xf32>
    %cst_32 = arith.constant 9.99999982E-14 : f32
    %70 = vector.broadcast %cst_32 : f32 to vector<2x8x1xf32>
    %71 = arith.addf %69, %70 : vector<2x8x1xf32>
    %72 = tpu.reciprocal %71 {approx = true} : vector<2x8x1xf32> -> vector<2x8x1xf32>
    %73 = vector.broadcast %72 : vector<2x8x1xf32> to vector<2x8x8xf32>
    %74 = arith.mulf %67, %73 : vector<2x8x8xf32>
    %cst_33 = arith.constant dense<0.000000e+00> : vector<2x8x8xf32>
    %75 = tpu.matmul %74, %57, %cst_33 {dimension_numbers = #tpu.dot_dimension_numbers<[2], [1], [1], [2], [0, 0, 0, 1, 1, 2], [0], [0]>} : vector<2x8x8xf32>, vector<2x8x8xf32>, vector<2x8x8xf32> -> vector<2x8x8xf32>
    %c0_34 = arith.constant 0 : index
    %c0_35 = arith.constant 0 : index
    %c0_36 = arith.constant 0 : index
    %76 = vector.load %arg16[%c0_34, %c0_35, %c0_36] : memref<2x8x32xf32, #tpu.memory_space<vmem>>, vector<2x8x8xf32>
    tpu.vector_store %arg16[%c0_34, %c0_35, %c0_36], %75 {strides = array<i32>} : memref<2x8x32xf32, #tpu.memory_space<vmem>>, vector<2x8x8xf32>,
    %77 = vector.extract_strided_slice %52 {offsets = [0, 0, 8], sizes = [2, 8, 8], strides = [1, 1, 1]} : vector<2x8x32xf32> to vector<2x8x8xf32>
    %78 = vector.extract_strided_slice %53 {offsets = [0, 0, 8], sizes = [2, 8, 8], strides = [1, 1, 1]} : vector<2x8x32xf32> to vector<2x8x8xf32>
    %79 = vector.extract_strided_slice %54 {offsets = [0, 0, 8], sizes = [2, 8, 8], strides = [1, 1, 1]} : vector<2x8x32xf32> to vector<2x8x8xf32>
    %cst_37 = arith.constant dense<0.000000e+00> : vector<2x8x8xf32>
    %80 = tpu.matmul %77, %78, %cst_37 {dimension_numbers = #tpu.dot_dimension_numbers<[2], [2], [1], [1], [0, 0, 0, 1, 1, 1], [0], [0]>} : vector<2x8x8xf32>, vector<2x8x8xf32>, vector<2x8x8xf32> -> vector<2x8x8xf32>
    %81 = vector.broadcast %3 : vector<2x1x8xf32> to vector<2x8x8xf32>
    %82 = arith.mulf %80, %81 : vector<2x8x8xf32>
    %cst_38 = arith.constant dense<0xFF800000> : vector<2x8xf32>
    %83 = vector.multi_reduction <maximumf>, %82, %cst_38 [2] : vector<2x8x8xf32> to vector<2x8xf32>
    %84 = vector.shape_cast %83 : vector<2x8xf32> to vector<2x8x1xf32>
    %85 = vector.broadcast %84 : vector<2x8x1xf32> to vector<2x8x8xf32>
    %86 = arith.subf %82, %85 : vector<2x8x8xf32>
    %87 = math.exp %86 : vector<2x8x8xf32>
    %88 = vector.broadcast %3 : vector<2x1x8xf32> to vector<2x8x8xf32>
    %89 = arith.mulf %87, %88 : vector<2x8x8xf32>
    %cst_39 = arith.constant dense<0.000000e+00> : vector<2x8xf32>
    %90 = vector.multi_reduction <add>, %89, %cst_39 [2] : vector<2x8x8xf32> to vector<2x8xf32>
    %91 = vector.shape_cast %90 : vector<2x8xf32> to vector<2x8x1xf32>
    %cst_40 = arith.constant 9.99999982E-14 : f32
    %92 = vector.broadcast %cst_40 : f32 to vector<2x8x1xf32>
    %93 = arith.addf %91, %92 : vector<2x8x1xf32>
    %94 = tpu.reciprocal %93 {approx = true} : vector<2x8x1xf32> -> vector<2x8x1xf32>
    %95 = vector.broadcast %94 : vector<2x8x1xf32> to vector<2x8x8xf32>
    %96 = arith.mulf %89, %95 : vector<2x8x8xf32>
    %cst_41 = arith.constant dense<0.000000e+00> : vector<2x8x8xf32>
    %97 = tpu.matmul %96, %79, %cst_41 {dimension_numbers = #tpu.dot_dimension_numbers<[2], [1], [1], [2], [0, 0, 0, 1, 1, 2], [0], [0]>} : vector<2x8x8xf32>, vector<2x8x8xf32>, vector<2x8x8xf32> -> vector<2x8x8xf32>
    %c0_42 = arith.constant 0 : index
    %c0_43 = arith.constant 0 : index
    %c8 = arith.constant 8 : index
    %98 = vector.load %arg16[%c0_42, %c0_43, %c8] : memref<2x8x32xf32, #tpu.memory_space<vmem>>, vector<2x8x8xf32>
    tpu.vector_store %arg16[%c0_42, %c0_43, %c8], %97 {strides = array<i32>} : memref<2x8x32xf32, #tpu.memory_space<vmem>>, vector<2x8x8xf32>,
    %99 = vector.extract_strided_slice %52 {offsets = [0, 0, 16], sizes = [2, 8, 8], strides = [1, 1, 1]} : vector<2x8x32xf32> to vector<2x8x8xf32>
    %100 = vector.extract_strided_slice %53 {offsets = [0, 0, 16], sizes = [2, 8, 8], strides = [1, 1, 1]} : vector<2x8x32xf32> to vector<2x8x8xf32>
    %101 = vector.extract_strided_slice %54 {offsets = [0, 0, 16], sizes = [2, 8, 8], strides = [1, 1, 1]} : vector<2x8x32xf32> to vector<2x8x8xf32>
    %cst_44 = arith.constant dense<0.000000e+00> : vector<2x8x8xf32>
    %102 = tpu.matmul %99, %100, %cst_44 {dimension_numbers = #tpu.dot_dimension_numbers<[2], [2], [1], [1], [0, 0, 0, 1, 1, 1], [0], [0]>} : vector<2x8x8xf32>, vector<2x8x8xf32>, vector<2x8x8xf32> -> vector<2x8x8xf32>
    %103 = vector.broadcast %3 : vector<2x1x8xf32> to vector<2x8x8xf32>
    %104 = arith.mulf %102, %103 : vector<2x8x8xf32>
    %cst_45 = arith.constant dense<0xFF800000> : vector<2x8xf32>
    %105 = vector.multi_reduction <maximumf>, %104, %cst_45 [2] : vector<2x8x8xf32> to vector<2x8xf32>
    %106 = vector.shape_cast %105 : vector<2x8xf32> to vector<2x8x1xf32>
    %107 = vector.broadcast %106 : vector<2x8x1xf32> to vector<2x8x8xf32>
    %108 = arith.subf %104, %107 : vector<2x8x8xf32>
    %109 = math.exp %108 : vector<2x8x8xf32>
    %110 = vector.broadcast %3 : vector<2x1x8xf32> to vector<2x8x8xf32>
    %111 = arith.mulf %109, %110 : vector<2x8x8xf32>
    %cst_46 = arith.constant dense<0.000000e+00> : vector<2x8xf32>
    %112 = vector.multi_reduction <add>, %111, %cst_46 [2] : vector<2x8x8xf32> to vector<2x8xf32>
    %113 = vector.shape_cast %112 : vector<2x8xf32> to vector<2x8x1xf32>
    %cst_47 = arith.constant 9.99999982E-14 : f32
    %114 = vector.broadcast %cst_47 : f32 to vector<2x8x1xf32>
    %115 = arith.addf %113, %114 : vector<2x8x1xf32>
    %116 = tpu.reciprocal %115 {approx = true} : vector<2x8x1xf32> -> vector<2x8x1xf32>
    %117 = vector.broadcast %116 : vector<2x8x1xf32> to vector<2x8x8xf32>
    %118 = arith.mulf %111, %117 : vector<2x8x8xf32>
    %cst_48 = arith.constant dense<0.000000e+00> : vector<2x8x8xf32>
    %119 = tpu.matmul %118, %101, %cst_48 {dimension_numbers = #tpu.dot_dimension_numbers<[2], [1], [1], [2], [0, 0, 0, 1, 1, 2], [0], [0]>} : vector<2x8x8xf32>, vector<2x8x8xf32>, vector<2x8x8xf32> -> vector<2x8x8xf32>
    %c0_49 = arith.constant 0 : index
    %c0_50 = arith.constant 0 : index
    %c16 = arith.constant 16 : index
    %120 = vector.load %arg16[%c0_49, %c0_50, %c16] : memref<2x8x32xf32, #tpu.memory_space<vmem>>, vector<2x8x8xf32>
    tpu.vector_store %arg16[%c0_49, %c0_50, %c16], %119 {strides = array<i32>} : memref<2x8x32xf32, #tpu.memory_space<vmem>>, vector<2x8x8xf32>,
    %121 = vector.extract_strided_slice %52 {offsets = [0, 0, 24], sizes = [2, 8, 8], strides = [1, 1, 1]} : vector<2x8x32xf32> to vector<2x8x8xf32>
    %122 = vector.extract_strided_slice %53 {offsets = [0, 0, 24], sizes = [2, 8, 8], strides = [1, 1, 1]} : vector<2x8x32xf32> to vector<2x8x8xf32>
    %123 = vector.extract_strided_slice %54 {offsets = [0, 0, 24], sizes = [2, 8, 8], strides = [1, 1, 1]} : vector<2x8x32xf32> to vector<2x8x8xf32>
    %cst_51 = arith.constant dense<0.000000e+00> : vector<2x8x8xf32>
    %124 = tpu.matmul %121, %122, %cst_51 {dimension_numbers = #tpu.dot_dimension_numbers<[2], [2], [1], [1], [0, 0, 0, 1, 1, 1], [0], [0]>} : vector<2x8x8xf32>, vector<2x8x8xf32>, vector<2x8x8xf32> -> vector<2x8x8xf32>
    %125 = vector.broadcast %3 : vector<2x1x8xf32> to vector<2x8x8xf32>
    %126 = arith.mulf %124, %125 : vector<2x8x8xf32>
    %cst_52 = arith.constant dense<0xFF800000> : vector<2x8xf32>
    %127 = vector.multi_reduction <maximumf>, %126, %cst_52 [2] : vector<2x8x8xf32> to vector<2x8xf32>
    %128 = vector.shape_cast %127 : vector<2x8xf32> to vector<2x8x1xf32>
    %129 = vector.broadcast %128 : vector<2x8x1xf32> to vector<2x8x8xf32>
    %130 = arith.subf %126, %129 : vector<2x8x8xf32>
    %131 = math.exp %130 : vector<2x8x8xf32>
    %132 = vector.broadcast %3 : vector<2x1x8xf32> to vector<2x8x8xf32>
    %133 = arith.mulf %131, %132 : vector<2x8x8xf32>
    %cst_53 = arith.constant dense<0.000000e+00> : vector<2x8xf32>
    %134 = vector.multi_reduction <add>, %133, %cst_53 [2] : vector<2x8x8xf32> to vector<2x8xf32>
    %135 = vector.shape_cast %134 : vector<2x8xf32> to vector<2x8x1xf32>
    %cst_54 = arith.constant 9.99999982E-14 : f32
    %136 = vector.broadcast %cst_54 : f32 to vector<2x8x1xf32>
    %137 = arith.addf %135, %136 : vector<2x8x1xf32>
    %138 = tpu.reciprocal %137 {approx = true} : vector<2x8x1xf32> -> vector<2x8x1xf32>
    %139 = vector.broadcast %138 : vector<2x8x1xf32> to vector<2x8x8xf32>
    %140 = arith.mulf %133, %139 : vector<2x8x8xf32>
    %cst_55 = arith.constant dense<0.000000e+00> : vector<2x8x8xf32>
    %141 = tpu.matmul %140, %123, %cst_55 {dimension_numbers = #tpu.dot_dimension_numbers<[2], [1], [1], [2], [0, 0, 0, 1, 1, 2], [0], [0]>} : vector<2x8x8xf32>, vector<2x8x8xf32>, vector<2x8x8xf32> -> vector<2x8x8xf32>
    %c0_56 = arith.constant 0 : index
    %c0_57 = arith.constant 0 : index
    %c24 = arith.constant 24 : index
    %142 = vector.load %arg16[%c0_56, %c0_57, %c24] : memref<2x8x32xf32, #tpu.memory_space<vmem>>, vector<2x8x8xf32>
    tpu.vector_store %arg16[%c0_56, %c0_57, %c24], %141 {strides = array<i32>} : memref<2x8x32xf32, #tpu.memory_space<vmem>>, vector<2x8x8xf32>,
    %c0_58 = arith.constant 0 : index
    %c0_59 = arith.constant 0 : index
    %c0_60 = arith.constant 0 : index
    %143 = vector.load %arg16[%c0_58, %c0_59, %c0_60] : memref<2x8x32xf32, #tpu.memory_space<vmem>>, vector<2x8x32xf32>
    %144 = vector.shape_cast %143 : vector<2x8x32xf32> to vector<16x32xf32>
    %145 = arith.truncf %144 : vector<16x32xf32> to vector<16x32xbf16>
    %c0_61 = arith.constant 0 : index
    %c0_62 = arith.constant 0 : index
    %146 = vector.load %arg11[%c0_61, %c0_62] : memref<32x32xbf16, #tpu.memory_space<vmem>>, vector<32x32xbf16>
    %cst_63 = arith.constant dense<0.000000e+00> : vector<16x32xf32>
    %147 = tpu.matmul %145, %146, %cst_63 {dimension_numbers = #tpu.dot_dimension_numbers<[1], [0], [0], [1], [0, 0, 1, 1], [], []>} : vector<16x32xbf16>, vector<32x32xbf16>, vector<16x32xf32> -> vector<16x32xf32>
    %c0_64 = arith.constant 0 : index
    %c0_65 = arith.constant 0 : index
    %148 = vector.load %arg12[%c0_64, %c0_65] : memref<1x32xf32, #tpu.memory_space<vmem>>, vector<1x32xf32>
    %149 = vector.broadcast %148 : vector<1x32xf32> to vector<16x32xf32>
    %150 = arith.addf %147, %149 : vector<16x32xf32>
    %151 = arith.addf %150, %42 : vector<16x32xf32>
    %c0_66 = arith.constant 0 : index
    %c0_67 = arith.constant 0 : index
    %152 = vector.load %arg13[%c0_66, %c0_67] : memref<1x32xf32, #tpu.memory_space<vmem>>, vector<1x32xf32>
    %c0_68 = arith.constant 0 : index
    %c0_69 = arith.constant 0 : index
    %153 = vector.load %arg14[%c0_68, %c0_69] : memref<1x32xf32, #tpu.memory_space<vmem>>, vector<1x32xf32>
    %cst_70 = arith.constant dense<0.000000e+00> : vector<16xf32>
    %154 = vector.multi_reduction <add>, %151, %cst_70 [1] : vector<16x32xf32> to vector<16xf32>
    %155 = vector.shape_cast %154 : vector<16xf32> to vector<16x1xf32>
    %cst_71 = arith.constant 3.200000e+01 : f32
    %156 = vector.broadcast %cst_71 : f32 to vector<16x1xf32>
    %157 = arith.divf %155, %156 : vector<16x1xf32>
    %158 = vector.broadcast %157 : vector<16x1xf32> to vector<16x32xf32>
    %159 = arith.subf %151, %158 : vector<16x32xf32>
    %160 = arith.mulf %159, %159 : vector<16x32xf32>
    %cst_72 = arith.constant dense<0.000000e+00> : vector<16xf32>
    %161 = vector.multi_reduction <add>, %160, %cst_72 [1] : vector<16x32xf32> to vector<16xf32>
    %162 = vector.shape_cast %161 : vector<16xf32> to vector<16x1xf32>
    %cst_73 = arith.constant 3.200000e+01 : f32
    %163 = vector.broadcast %cst_73 : f32 to vector<16x1xf32>
    %164 = arith.divf %162, %163 : vector<16x1xf32>
    %165 = math.sqrt %164 : vector<16x1xf32>
    %166 = vector.broadcast %157 : vector<16x1xf32> to vector<16x32xf32>
    %167 = arith.subf %151, %166 : vector<16x32xf32>
    %168 = vector.broadcast %152 : vector<1x32xf32> to vector<16x32xf32>
    %169 = arith.mulf %168, %167 : vector<16x32xf32>
    %cst_74 = arith.constant 9.99999997E-7 : f32
    %170 = vector.broadcast %cst_74 : f32 to vector<16x1xf32>
    %171 = arith.addf %165, %170 : vector<16x1xf32>
    %172 = vector.broadcast %171 : vector<16x1xf32> to vector<16x32xf32>
    %173 = arith.divf %169, %172 : vector<16x32xf32>
    %174 = vector.broadcast %153 : vector<1x32xf32> to vector<16x32xf32>
    %175 = arith.addf %173, %174 : vector<16x32xf32>
    %176 = vector.shape_cast %175 : vector<16x32xf32> to vector<2x8x32xf32>
    %c0_75 = arith.constant 0 : index
    %c0_76 = arith.constant 0 : index
    %c0_77 = arith.constant 0 : index
    %177 = vector.load %arg15[%c0_75, %c0_76, %c0_77] : memref<2x8x32xf32, #tpu.memory_space<vmem>>, vector<2x8x32xf32>
    tpu.vector_store %arg15[%c0_75, %c0_76, %c0_77], %176 {strides = array<i32>} : memref<2x8x32xf32, #tpu.memory_space<vmem>>, vector<2x8x32xf32>,
    return
  }
  func.func @transform_0(%arg0: i32) -> (i32, i32, i32) {
    %c0_i32 = arith.constant 0 : i32
    %c0_i32_0 = arith.constant 0 : i32
    %c0_i32_1 = arith.constant 0 : i32
    return %arg0, %c0_i32, %c0_i32_0 : i32, i32, i32
  }
  func.func @transform_1(%arg0: i32) -> (i32, i32) {
    %c0_i32 = arith.constant 0 : i32
    %c0_i32_0 = arith.constant 0 : i32
    return %arg0, %c0_i32 : i32, i32
  }
  func.func @transform_2(%arg0: i32) -> (i32, i32) {
    %c0_i32 = arith.constant 0 : i32
    %c0_i32_0 = arith.constant 0 : i32
    %c0_i32_1 = arith.constant 0 : i32
    return %c0_i32, %c0_i32_0 : i32, i32
  }
  func.func @transform_3(%arg0: i32) -> (i32, i32) {
    %c0_i32 = arith.constant 0 : i32
    %c0_i32_0 = arith.constant 0 : i32
    %c0_i32_1 = arith.constant 0 : i32
    return %c0_i32, %c0_i32_0 : i32, i32
  }
  func.func @transform_4(%arg0: i32) -> (i32, i32) {
    %c0_i32 = arith.constant 0 : i32
    %c0_i32_0 = arith.constant 0 : i32
    %c0_i32_1 = arith.constant 0 : i32
    return %c0_i32, %c0_i32_0 : i32, i32
  }
  func.func @transform_5(%arg0: i32) -> (i32, i32) {
    %c0_i32 = arith.constant 0 : i32
    %c0_i32_0 = arith.constant 0 : i32
    %c0_i32_1 = arith.constant 0 : i32
    return %c0_i32, %c0_i32_0 : i32, i32
  }
  func.func @transform_6(%arg0: i32) -> (i32, i32) {
    %c0_i32 = arith.constant 0 : i32
    %c0_i32_0 = arith.constant 0 : i32
    %c0_i32_1 = arith.constant 0 : i32
    return %c0_i32, %c0_i32_0 : i32, i32
  }
  func.func @transform_7(%arg0: i32) -> (i32, i32) {
    %c0_i32 = arith.constant 0 : i32
    %c0_i32_0 = arith.constant 0 : i32
    %c0_i32_1 = arith.constant 0 : i32
    return %c0_i32, %c0_i32_0 : i32, i32
  }
  func.func @transform_8(%arg0: i32) -> (i32, i32) {
    %c0_i32 = arith.constant 0 : i32
    %c0_i32_0 = arith.constant 0 : i32
    %c0_i32_1 = arith.constant 0 : i32
    return %c0_i32, %c0_i32_0 : i32, i32
  }
  func.func @transform_9(%arg0: i32) -> (i32, i32) {
    %c0_i32 = arith.constant 0 : i32
    %c0_i32_0 = arith.constant 0 : i32
    %c0_i32_1 = arith.constant 0 : i32
    return %c0_i32, %c0_i32_0 : i32, i32
  }
  func.func @transform_10(%arg0: i32) -> (i32, i32) {
    %c0_i32 = arith.constant 0 : i32
    %c0_i32_0 = arith.constant 0 : i32
    %c0_i32_1 = arith.constant 0 : i32
    return %c0_i32, %c0_i32_0 : i32, i32
  }
  func.func @transform_11(%arg0: i32) -> (i32, i32) {
    %c0_i32 = arith.constant 0 : i32
    %c0_i32_0 = arith.constant 0 : i32
    %c0_i32_1 = arith.constant 0 : i32
    return %c0_i32, %c0_i32_0 : i32, i32
  }
  func.func @transform_12(%arg0: i32) -> (i32, i32) {
    %c0_i32 = arith.constant 0 : i32
    %c0_i32_0 = arith.constant 0 : i32
    %c0_i32_1 = arith.constant 0 : i32
    return %c0_i32, %c0_i32_0 : i32, i32
  }
  func.func @transform_13(%arg0: i32) -> (i32, i32) {
    %c0_i32 = arith.constant 0 : i32
    %c0_i32_0 = arith.constant 0 : i32
    %c0_i32_1 = arith.constant 0 : i32
    return %c0_i32, %c0_i32_0 : i32, i32
  }
  func.func @transform_14(%arg0: i32) -> (i32, i32, i32) {
    %c0_i32 = arith.constant 0 : i32
    %c0_i32_0 = arith.constant 0 : i32
    %c0_i32_1 = arith.constant 0 : i32
    return %arg0, %c0_i32, %c0_i32_0 : i32, i32, i32
  }
}

</mosaic_0001>

<llo_original>
// kernel: tpu_custom_call.1
$region0: #{tpu_custom_call.1}
  #allocation0 [shape = 'u32[]', space=smem, size = 0x4, offset = 0x4, fixed_abs, tag = 'smem constant byte address 0x4 - core index']
  #allocation1 [shape = 'u32[144,128]{1,0:T(1,128)}', space=vmem, size = 0x12000, scoped, tag = 'internal scratch']
  #allocation2 [shape = 'f32[2,8,32]{2,1,0:T(8,128)}', space=vmem, size = 0x2000, scoped, tag = 'scratch operand']
  %s0 = inlined_call_operand.vmem [shape: f32[2,8,32], index: 0, kind: input, shape index: {}]
  %s1 = inlined_call_operand.vmem [shape: f32[2,8], index: 1, kind: input, shape index: {}]
  %s2 = inlined_call_operand.vmem [shape: bf16[32,64], index: 2, kind: input, shape index: {}]
  %s3 = inlined_call_operand.hbm [shape: f32[1,64], index: 3, kind: input, shape index: {}]
  %s4 = inlined_call_operand.vmem [shape: bf16[64,32], index: 4, kind: input, shape index: {}]
  %s5 = inlined_call_operand.hbm [shape: f32[1,32], index: 5, kind: input, shape index: {}]
  %s6 = inlined_call_operand.vmem [shape: f32[1,32], index: 6, kind: input, shape index: {}]
  %s7 = inlined_call_operand.vmem [shape: f32[1,32], index: 7, kind: input, shape index: {}]
  %s8 = inlined_call_operand.vmem [shape: bf16[32,96], index: 8, kind: input, shape index: {}]
  %s9 = inlined_call_operand.vmem [shape: f32[1,96], index: 9, kind: input, shape index: {}]
  %s10 = inlined_call_operand.vmem [shape: bf16[32,32], index: 10, kind: input, shape index: {}]
  %s11 = inlined_call_operand.vmem [shape: f32[1,32], index: 11, kind: input, shape index: {}]
  %s12 = inlined_call_operand.vmem [shape: f32[1,32], index: 12, kind: input, shape index: {}]
  %s13 = inlined_call_operand.vmem [shape: f32[1,32], index: 13, kind: input, shape index: {}]
  %s14 = inlined_call_operand.hbm [shape: f32[2,8,32], index: 14, kind: output, shape index: {}]
  %s15 = sld [smem:[#allocation0]]
  $region74: #{tpu_custom_call.1} parent=0
    _
  %s17 = ssub.s32 1, %s15
  %s18 = scalar_select 0, %s17, %s15
  $region1: #{tpu_custom_call.1} parent=0
    #allocation3 [shape = 'u8[512]{0}', space=vmem, size = 0x400, scoped, tag = 'input window, operand 3, single buffered']
    #allocation4 [shape = 's32[1]{0}', space=sflag, size = 0x4, scoped, tag = 'scoped memory for tpu_custom_call.1']
    #allocation5 [shape = 's32[1]{0}', space=sflag, size = 0x4, scoped, tag = 'scoped memory for tpu_custom_call.1']
    #allocation6 [shape = 'u8[512]{0}', space=vmem, size = 0x400, scoped, tag = 'input window, operand 5, single buffered']
    #allocation7 [shape = 's32[1]{0}', space=sflag, size = 0x4, scoped, tag = 'scoped memory for tpu_custom_call.1']
    #allocation8 [shape = 'u8[8192]{0}', space=vmem, size = 0x2000, scoped, tag = 'output window, operand 0, single buffered']
    %19 = vsyncpa [#allocation4], 0
    %20 = vsyncpa [#allocation7], 0
    %21 = vsyncpa [#allocation5], 0
    // Predicated region
    $region2: #{tpu_custom_call.1} parent=1 // pred_check
      _
    $region3: #{tpu_custom_call.1} parent=1 // pred_check_branch
      %23 = sbr.rel (0) target = $region5
    $region4: #{tpu_custom_call.1} parent=1 // pred_region
      _
    $region5: #{tpu_custom_call.1} parent=1 // pred_fallthru
      _
    // Predicated region
    $region6: #{tpu_custom_call.1} parent=1 // pred_check
      _
    $region7: #{tpu_custom_call.1} parent=1 // pred_check_branch
      %25 = sbr.rel (0) target = $region9
    $region8: #{tpu_custom_call.1} parent=1 // pred_region
      _
    $region9: #{tpu_custom_call.1} parent=1 // pred_fallthru
      _
    // Predicated region
    $region10: #{tpu_custom_call.1} parent=1 // pred_check
      _
    $region11: #{tpu_custom_call.1} parent=1 // pred_check_branch
      %27 = sbr.rel (0) target = $region13
    $region12: #{tpu_custom_call.1} parent=1 // pred_region
      _
    $region13: #{tpu_custom_call.1} parent=1 // pred_fallthru
      _
    // Predicated region
    $region14: #{tpu_custom_call.1} parent=1 // pred_check
      _
    $region15: #{tpu_custom_call.1} parent=1 // pred_check_branch
      %29 = sbr.rel (0) target = $region17
    $region16: #{tpu_custom_call.1} parent=1 // pred_region
      %s31 = ssub.s32 16, 16
      %32 = vsyncadd [#allocation4], %s31
      %s34 = sshll.u32 [#allocation3], 4
      %s35 = int_to_ptr.vmem [resolvable:$true] %s34
      %37 = dma.hbm_to_vmem [thread:$0]  %s3, 16, %s35, [#allocation4]
    $region17: #{tpu_custom_call.1} parent=1 // pred_fallthru
      _
    // Predicated region
    $region18: #{tpu_custom_call.1} parent=1 // pred_check
      _
    $region19: #{tpu_custom_call.1} parent=1 // pred_check_branch
      %39 = sbr.rel (0) target = $region21
    $region20: #{tpu_custom_call.1} parent=1 // pred_region
      _
    $region21: #{tpu_custom_call.1} parent=1 // pred_fallthru
      _
    // Predicated region
    $region22: #{tpu_custom_call.1} parent=1 // pred_check
      _
    $region23: #{tpu_custom_call.1} parent=1 // pred_check_branch
      %41 = sbr.rel (0) target = $region25
    $region24: #{tpu_custom_call.1} parent=1 // pred_region
      %s43 = ssub.s32 16, 16
      %44 = vsyncadd [#allocation7], %s43
      %s46 = sshll.u32 [#allocation6], 4
      %s47 = int_to_ptr.vmem [resolvable:$true] %s46
      %49 = dma.hbm_to_vmem [thread:$0]  %s5, 16, %s47, [#allocation7]
    $region25: #{tpu_custom_call.1} parent=1 // pred_fallthru
      _
    // Predicated region
    $region26: #{tpu_custom_call.1} parent=1 // pred_check
      _
    $region27: #{tpu_custom_call.1} parent=1 // pred_check_branch
      %51 = sbr.rel (0) target = $region29
    $region28: #{tpu_custom_call.1} parent=1 // pred_region
      _
    $region29: #{tpu_custom_call.1} parent=1 // pred_fallthru
      _
    // Predicated region
    $region30: #{tpu_custom_call.1} parent=1 // pred_check
      _
    $region31: #{tpu_custom_call.1} parent=1 // pred_check_branch
      %53 = sbr.rel (0) target = $region33
    $region32: #{tpu_custom_call.1} parent=1 // pred_region
      _
    $region33: #{tpu_custom_call.1} parent=1 // pred_fallthru
      _
    // Predicated region
    $region34: #{tpu_custom_call.1} parent=1 // pred_check
      _
    $region35: #{tpu_custom_call.1} parent=1 // pred_check_branch
      %55 = sbr.rel (0) target = $region37
    $region36: #{tpu_custom_call.1} parent=1 // pred_region
      _
    $region37: #{tpu_custom_call.1} parent=1 // pred_fallthru
      _
    // Predicated region
    $region38: #{tpu_custom_call.1} parent=1 // pred_check
      _
    $region39: #{tpu_custom_call.1} parent=1 // pred_check_branch
      %57 = sbr.rel (0) target = $region41
    $region40: #{tpu_custom_call.1} parent=1 // pred_region
      _
    $region41: #{tpu_custom_call.1} parent=1 // pred_fallthru
      _
    // Predicated region
    $region42: #{tpu_custom_call.1} parent=1 // pred_check
      _
    $region43: #{tpu_custom_call.1} parent=1 // pred_check_branch
      %59 = sbr.rel (0) target = $region45
    $region44: #{tpu_custom_call.1} parent=1 // pred_region
      _
    $region45: #{tpu_custom_call.1} parent=1 // pred_fallthru
      _
    // Predicated region
    $region46: #{tpu_custom_call.1} parent=1 // pred_check
      _
    $region47: #{tpu_custom_call.1} parent=1 // pred_check_branch
      %61 = sbr.rel (0) target = $region49
    $region48: #{tpu_custom_call.1} parent=1 // pred_region
      _
    $region49: #{tpu_custom_call.1} parent=1 // pred_fallthru
      _
    // Predicated region
    $region50: #{tpu_custom_call.1} parent=1 // pred_check
      _
    $region51: #{tpu_custom_call.1} parent=1 // pred_check_branch
      %63 = sbr.rel (0) target = $region53
    $region52: #{tpu_custom_call.1} parent=1 // pred_region
      _
    $region53: #{tpu_custom_call.1} parent=1 // pred_fallthru
      _
    // Predicated region
    $region54: #{tpu_custom_call.1} parent=1 // pred_check
      _
    $region55: #{tpu_custom_call.1} parent=1 // pred_check_branch
      %65 = sbr.rel (0) target = $region57
    $region56: #{tpu_custom_call.1} parent=1 // pred_region
      _
    $region57: #{tpu_custom_call.1} parent=1 // pred_fallthru
      _
    // Predicated region
    $region58: #{tpu_custom_call.1} parent=1 // pred_check
      _
    $region59: #{tpu_custom_call.1} parent=1 // pred_check_branch
      %67 = sbr.rel (0) target = $region61
    $region60: #{tpu_custom_call.1} parent=1 // pred_region
      %68 = dma.done [#allocation4], 16
    $region61: #{tpu_custom_call.1} parent=1 // pred_fallthru
      _
    // Predicated region
    $region62: #{tpu_custom_call.1} parent=1 // pred_check
      _
    $region63: #{tpu_custom_call.1} parent=1 // pred_check_branch
      %70 = sbr.rel (0) target = $region65
    $region64: #{tpu_custom_call.1} parent=1 // pred_region
      %71 = dma.done [#allocation7], 16
    $region65: #{tpu_custom_call.1} parent=1 // pred_fallthru
      _
    %v73 = vld [vmem:[%s0] sm:$0xff]
    %v74 = vld [vmem:[%s0 + $0x8] sm:$0xff]
    %v75 = vld [vmem:[%s1] sm:$0x3]
    %v78 = vunpack.c.l.s4 1966171168
    %v79 = vunpack.c.0.s8 %v78
    %v80 = vlaneseq
    %v81 = vshrl.u32 %v80, 7
    %v82 = vsub.s32 %v79, %v81
    %v83 = vrot.slane %v75, %v82
    %v84 = vcombine.high %v83, %v83
    %v86 = vunpack.c.l.s4 1966171168
    %v87 = vunpack.c.0.s8 %v86
    %v88 = vlaneseq
    %v89 = vshrl.u32 %v88, 7
    %v90 = vsub.s32 %v87, %v89
    %v91 = vrot.slane %v83, %v90
    %v93 = vunpack.c.l.s4 1966171168
    %v94 = vunpack.c.0.s8 %v93
    %v95 = vlaneseq
    %v96 = vshrl.u32 %v95, 7
    %v97 = vsub.s32 %v94, %v96
    %v98 = vrot.slane %v84, %v97
    %v99 = vpack.c.bf16 %v74, %v73
    %v100 = vld [vmem:[%s2] sm:$0xf]
    %v101 = vld [vmem:[%s2 + $0x4] sm:$0xf]
    %v102 = vld [vmem:[%s2 + $0x8] sm:$0xf]
    %v103 = vld [vmem:[%s2 + $0xc] sm:$0xf]
    %v104 = vld [vmem:[#allocation3] sm:$0x1]
    %v106 = vlaneseq
    %v107 = vshrl.u32 %v106, 7
    %v108 = vsub.s32 0, %v107
    %v109 = vrot.slane %v104, %v108
    %v115 = vunpack.c.l.b16 %v100
    %v116 = vunpack.c.l.b16 %v101
    %v117 = vunpack.c.l.b16 %v102
    %v118 = vunpack.c.l.b16 %v103
    %v119 = vpack.c.b16 %v116, %v115
    %v120 = vpack.c.b16 %v118, %v117
    %vm123 = vcmask 261120
    %v125 = vsel %vm123, %v99, 0
    %127 = vmatprep.subr.bf16.mxu0 0
    %128 = vmatpush1.bf16.msra.mxu0 %v119
    %129 = vmatprep.subr.bf16.mxu0 0
    %130 = vmatpush1.bf16.msra.mxu0 %v120
    %131 = vmatprep.subr.bf16.mxu0 0
    %132 = vmatpush1.bf16.msra.mxu0 0
    %133 = vmatprep.subr.bf16.mxu0 0
    %134 = vmatpush1.bf16.msra.mxu0 0
    %135 = vmatprep.subr.bf16.mxu0 0
    %136 = vmatpush1.bf16.msra.mxu0 0
    %137 = vmatprep.subr.bf16.mxu0 0
    %138 = vmatpush1.bf16.msra.mxu0 0
    %139 = vmatprep.subr.bf16.mxu0 0
    %140 = vmatpush1.bf16.msra.mxu0 0
    %141 = vmatprep.subr.bf16.mxu0 0
    %142 = vmatpush1.bf16.msra.mxu0 0
    %143 = vmatprep.subr.bf16.mxu0 0
    %144 = vmatpush1.bf16.msra.mxu0 0
    %145 = vmatprep.subr.bf16.mxu0 0
    %146 = vmatpush1.bf16.msra.mxu0 0
    %147 = vmatprep.subr.bf16.mxu0 0
    %148 = vmatpush1.bf16.msra.mxu0 0
    %149 = vmatprep.subr.bf16.mxu0 0
    %150 = vmatpush1.bf16.msra.mxu0 0
    %151 = vmatprep.subr.bf16.mxu0 0
    %152 = vmatpush1.bf16.msra.mxu0 0
    %153 = vmatprep.subr.bf16.mxu0 0
    %154 = vmatpush1.bf16.msra.mxu0 0
    %155 = vmatprep.subr.bf16.mxu0 0
    %156 = vmatpush1.bf16.msra.mxu0 0
    %157 = vmatprep.subr.bf16.mxu0 0
    %158 = vmatpush1.bf16.msra.mxu0 0
    %159 = vmatprep.mubr.bf16.mxu0 0
    %160 = vmatmul.mubr.bf16.gmra.mrb[0].mxu0 %v125
    %v161 = vpop.f32.mrb[0].mxu0
    %v162 = vadd.f32 %v109, %v161
    %v163 = vpop.f32.mrb[0].mxu0
    %v164 = vpop.f32.mrb[0].mxu0
    %v165 = vadd.f32 %v109, %v164
    %v166 = vpop.f32.mrb[0].mxu0
    %167 = vdwg.mxu0
    %v168 = vmax.f32 %v162, 0.0
    %v169 = vmax.f32 %v165, 0.0
    %v170 = vpack.c.bf16 %v169, %v168
    %v171 = vld [vmem:[%s4] sm:$0xf]
    %v172 = vld [vmem:[%s4 + $0x4] sm:$0xf]
    %v173 = vld [vmem:[%s4 + $0x8] sm:$0xf]
    %v174 = vld [vmem:[%s4 + $0xc] sm:$0xf]
    %v175 = vld [vmem:[%s4 + $0x10] sm:$0xf]
    %v176 = vld [vmem:[%s4 + $0x14] sm:$0xf]
    %v177 = vld [vmem:[%s4 + $0x18] sm:$0xf]
    %v178 = vld [vmem:[%s4 + $0x1c] sm:$0xf]
    %v179 = vld [vmem:[#allocation6] sm:$0x1]
    %v181 = vlaneseq
    %v182 = vshrl.u32 %v181, 7
    %v183 = vsub.s32 0, %v182
    %v184 = vrot.slane %v179, %v183
    %v194 = vunpack.c.l.b16 %v171
    %v195 = vunpack.c.l.b16 %v172
    %v196 = vunpack.c.l.b16 %v173
    %v197 = vunpack.c.l.b16 %v174
    %v198 = vunpack.c.l.b16 %v175
    %v199 = vunpack.c.l.b16 %v176
    %v200 = vunpack.c.l.b16 %v177
    %v201 = vunpack.c.l.b16 %v178
    %v202 = vpack.c.b16 %v195, %v194
    %v203 = vpack.c.b16 %v197, %v196
    %v204 = vpack.c.b16 %v199, %v198
    %v205 = vpack.c.b16 %v201, %v200
    %vm210 = vcmask 523264
    %v212 = vsel %vm210, %v170, 0
    %214 = vmatprep.subr.bf16.mxu0 0
    %215 = vmatpush1.bf16.msra.mxu0 %v202
    %216 = vmatprep.subr.bf16.mxu0 0
    %217 = vmatpush1.bf16.msra.mxu0 %v203
    %218 = vmatprep.subr.bf16.mxu0 0
    %219 = vmatpush1.bf16.msra.mxu0 %v204
    %220 = vmatprep.subr.bf16.mxu0 0
    %221 = vmatpush1.bf16.msra.mxu0 %v205
    %222 = vmatprep.subr.bf16.mxu0 0
    %223 = vmatpush1.bf16.msra.mxu0 0
    %224 = vmatprep.subr.bf16.mxu0 0
    %225 = vmatpush1.bf16.msra.mxu0 0
    %226 = vmatprep.subr.bf16.mxu0 0
    %227 = vmatpush1.bf16.msra.mxu0 0
    %228 = vmatprep.subr.bf16.mxu0 0
    %229 = vmatpush1.bf16.msra.mxu0 0
    %230 = vmatprep.subr.bf16.mxu0 0
    %231 = vmatpush1.bf16.msra.mxu0 0
    %232 = vmatprep.subr.bf16.mxu0 0
    %233 = vmatpush1.bf16.msra.mxu0 0
    %234 = vmatprep.subr.bf16.mxu0 0
    %235 = vmatpush1.bf16.msra.mxu0 0
    %236 = vmatprep.subr.bf16.mxu0 0
    %237 = vmatpush1.bf16.msra.mxu0 0
    %238 = vmatprep.subr.bf16.mxu0 0
    %239 = vmatpush1.bf16.msra.mxu0 0
    %240 = vmatprep.subr.bf16.mxu0 0
    %241 = vmatpush1.bf16.msra.mxu0 0
    %242 = vmatprep.subr.bf16.mxu0 0
    %243 = vmatpush1.bf16.msra.mxu0 0
    %244 = vmatprep.subr.bf16.mxu0 0
    %245 = vmatpush1.bf16.msra.mxu0 0
    %246 = vmatprep.mubr.bf16.mxu0 0
    %247 = vmatmul.mubr.bf16.gmra.mrb[0].mxu0 %v212
    %v248 = vpop.f32.mrb[0].mxu0
    %v249 = vadd.f32 %v184, %v248
    %v250 = vpop.f32.mrb[0].mxu0
    %v251 = vpop.f32.mrb[0].mxu0
    %v252 = vadd.f32 %v184, %v251
    %v253 = vpop.f32.mrb[0].mxu0
    %254 = vdwg.mxu0
    %v255 = vadd.f32 %v249, %v73
    %v256 = vadd.f32 %v252, %v74
    %v257 = vld [vmem:[%s6] sm:$0x1]
    %v258 = vld [vmem:[%s7] sm:$0x1]
    %v259 = vsel %vm123, %v255, 0.0
    %260 = vadd.xlane.f32.xlu0 %v259
    %v261 = vpop.xlane.xlu0 %260
    %v262 = vsel %vm123, %v256, 0.0
    %263 = vadd.xlane.f32.xlu0 %v262
    %v264 = vpop.xlane.xlu0 %263
    %v265 = vrcp.pop 32.0
    %v266 = vmul.f32 %v261, %v265
    %v267 = vmul.f32 %v264, %v265
    %v268 = vsub.f32 %v255, %v266
    %v269 = vsub.f32 %v256, %v267
    %v270 = vmul.f32 %v268, %v268
    %v271 = vmul.f32 %v269, %v269
    %v272 = vsel %vm123, %v270, 0.0
    %273 = vadd.xlane.f32.xlu0 %v272
    %v274 = vpop.xlane.xlu0 %273
    %v275 = vsel %vm123, %v271, 0.0
    %276 = vadd.xlane.f32.xlu0 %v275
    %v277 = vpop.xlane.xlu0 %276
    %v278 = vmul.f32 %v274, %v265
    %v279 = vmul.f32 %v277, %v265
    %v280 = vrsqrt.pop %v278
    %v281 = vmul.f32 %v278, %v280
    %vm282 = vcmp.eq.f32.partialorder %v278, inf
    %v283 = vsel %vm282, %v278, %v281
    %vm284 = vcmp.eq.f32.partialorder %v278, 0.0
    %v285 = vand.u32 %v278, 2147483648
    %v286 = vsel %vm284, %v285, %v283
    %v287 = vrsqrt.pop %v279
    %v288 = vmul.f32 %v279, %v287
    %vm289 = vcmp.eq.f32.partialorder %v279, inf
    %v290 = vsel %vm289, %v279, %v288
    %vm291 = vcmp.eq.f32.partialorder %v279, 0.0
    %v292 = vand.u32 %v279, 2147483648
    %v293 = vsel %vm291, %v292, %v290
    %v295 = vlaneseq
    %v296 = vshrl.u32 %v295, 7
    %v297 = vsub.s32 0, %v296
    %v298 = vrot.slane %v257, %v297
    %v300 = vmul.f32 %v298, %v268
    %v301 = vmul.f32 %v298, %v269
    %v302 = vadd.f32 %v286, 1e-06
    %v303 = vadd.f32 %v293, 1e-06
    %v304 = vrcp.pop %v302
    %v305 = vmul.f32 %v300, %v304
    %v306 = vrcp.pop %v303
    %v307 = vmul.f32 %v301, %v306
    %v309 = vlaneseq
    %v310 = vshrl.u32 %v309, 7
    %v311 = vsub.s32 0, %v310
    %v312 = vrot.slane %v258, %v311
    %v314 = vadd.f32 %v305, %v312
    %v315 = vadd.f32 %v307, %v312
    %v316 = vpack.c.bf16 %v315, %v314
    %v317 = vld [vmem:[%s8] sm:$0xf]
    %v318 = vld [vmem:[%s8 + $0x4] sm:$0xf]
    %v319 = vld [vmem:[%s8 + $0x8] sm:$0xf]
    %v320 = vld [vmem:[%s8 + $0xc] sm:$0xf]
    %v321 = vld [vmem:[%s9] sm:$0x1]
    %v323 = vlaneseq
    %v324 = vshrl.u32 %v323, 7
    %v325 = vsub.s32 0, %v324
    %v326 = vrot.slane %v321, %v325
    %v332 = vunpack.c.l.b16 %v317
    %v333 = vunpack.c.l.b16 %v318
    %v334 = vunpack.c.l.b16 %v319
    %v335 = vunpack.c.l.b16 %v320
    %v336 = vpack.c.b16 %v333, %v332
    %v337 = vpack.c.b16 %v335, %v334
    %v341 = vsel %vm123, %v316, 0
    %343 = vmatprep.subr.bf16.mxu0 0
    %344 = vmatpush1.bf16.msra.mxu0 %v336
    %345 = vmatprep.subr.bf16.mxu0 0
    %346 = vmatpush1.bf16.msra.mxu0 %v337
    %347 = vmatprep.subr.bf16.mxu0 0
    %348 = vmatpush1.bf16.msra.mxu0 0
    %349 = vmatprep.subr.bf16.mxu0 0
    %350 = vmatpush1.bf16.msra.mxu0 0
    %351 = vmatprep.subr.bf16.mxu0 0
    %352 = vmatpush1.bf16.msra.mxu0 0
    %353 = vmatprep.subr.bf16.mxu0 0
    %354 = vmatpush1.bf16.msra.mxu0 0
    %355 = vmatprep.subr.bf16.mxu0 0
    %356 = vmatpush1.bf16.msra.mxu0 0
    %357 = vmatprep.subr.bf16.mxu0 0
    %358 = vmatpush1.bf16.msra.mxu0 0
    %359 = vmatprep.subr.bf16.mxu0 0
    %360 = vmatpush1.bf16.msra.mxu0 0
    %361 = vmatprep.subr.bf16.mxu0 0
    %362 = vmatpush1.bf16.msra.mxu0 0
    %363 = vmatprep.subr.bf16.mxu0 0
    %364 = vmatpush1.bf16.msra.mxu0 0
    %365 = vmatprep.subr.bf16.mxu0 0
    %366 = vmatpush1.bf16.msra.mxu0 0
    %367 = vmatprep.subr.bf16.mxu0 0
    %368 = vmatpush1.bf16.msra.mxu0 0
    %369 = vmatprep.subr.bf16.mxu0 0
    %370 = vmatpush1.bf16.msra.mxu0 0
    %371 = vmatprep.subr.bf16.mxu0 0
    %372 = vmatpush1.bf16.msra.mxu0 0
    %373 = vmatprep.subr.bf16.mxu0 0
    %374 = vmatpush1.bf16.msra.mxu0 0
    %375 = vmatprep.mubr.bf16.mxu0 0
    %376 = vmatmul.mubr.bf16.gmra.mrb[0].mxu0 %v341
    %v377 = vpop.f32.mrb[0].mxu0
    %v378 = vadd.f32 %v326, %v377
    %v379 = vpop.f32.mrb[0].mxu0
    %v380 = vpop.f32.mrb[0].mxu0
    %v381 = vadd.f32 %v326, %v380
    %v382 = vpop.f32.mrb[0].mxu0
    %383 = vdwg.mxu0
    %v384 = vmul.f32 %v378, 0.35355338
    %v385 = vmul.f32 %v381, 0.35355338
    %387 = vrot.lane.b32.xlu0 %v378, 96
    %v388 = vpop.permute.xlu0 %387
    %vm389 = vcmask 64512
    %v391 = vsel %vm389, %v384, 0
    %v393 = vsel %vm389, %v388, 0
    %395 = vmatprep.subr.mxu0 0.0
    %396 = vmatpush1.xpose.msra.mxu0 %v393
    %397 = vmatprep.subr.mxu0 0.0
    %398 = vmatpush1.xpose.msra.mxu0 0.0
    %399 = vmatprep.subr.mxu0 0.0
    %400 = vmatpush1.xpose.msra.mxu0 0.0
    %401 = vmatprep.subr.mxu0 0.0
    %402 = vmatpush1.xpose.msra.mxu0 0.0
    %403 = vmatprep.subr.mxu0 0.0
    %404 = vmatpush1.xpose.msra.mxu0 0.0
    %405 = vmatprep.subr.mxu0 0.0
    %406 = vmatpush1.xpose.msra.mxu0 0.0
    %407 = vmatprep.subr.mxu0 0.0
    %408 = vmatpush1.xpose.msra.mxu0 0.0
    %409 = vmatprep.subr.mxu0 0.0
    %410 = vmatpush1.xpose.msra.mxu0 0.0
    %411 = vmatprep.subr.mxu0 0.0
    %412 = vmatpush1.xpose.msra.mxu0 0.0
    %413 = vmatprep.subr.mxu0 0.0
    %414 = vmatpush1.xpose.msra.mxu0 0.0
    %415 = vmatprep.subr.mxu0 0.0
    %416 = vmatpush1.xpose.msra.mxu0 0.0
    %417 = vmatprep.subr.mxu0 0.0
    %418 = vmatpush1.xpose.msra.mxu0 0.0
    %419 = vmatprep.subr.mxu0 0.0
    %420 = vmatpush1.xpose.msra.mxu0 0.0
    %421 = vmatprep.subr.mxu0 0.0
    %422 = vmatpush1.xpose.msra.mxu0 0.0
    %423 = vmatprep.subr.mxu0 0.0
    %424 = vmatpush1.xpose.msra.mxu0 0.0
    %425 = vmatprep.subr.mxu0 0.0
    %426 = vmatpush1.xpose.msra.mxu0 0.0
    %427 = vmatprep.subr.mxu0 0.0
    %428 = vmatpush1.xpose.msra.mxu0 0.0
    %429 = vmatprep.subr.mxu0 0.0
    %430 = vmatpush1.xpose.msra.mxu0 0.0
    %431 = vmatprep.subr.mxu0 0.0
    %432 = vmatpush1.xpose.msra.mxu0 0.0
    %433 = vmatprep.subr.mxu0 0.0
    %434 = vmatpush1.xpose.msra.mxu0 0.0
    %435 = vmatprep.subr.mxu0 0.0
    %436 = vmatpush1.xpose.msra.mxu0 0.0
    %437 = vmatprep.subr.mxu0 0.0
    %438 = vmatpush1.xpose.msra.mxu0 0.0
    %439 = vmatprep.subr.mxu0 0.0
    %440 = vmatpush1.xpose.msra.mxu0 0.0
    %441 = vmatprep.subr.mxu0 0.0
    %442 = vmatpush1.xpose.msra.mxu0 0.0
    %443 = vmatprep.subr.mxu0 0.0
    %444 = vmatpush1.xpose.msra.mxu0 0.0
    %445 = vmatprep.subr.mxu0 0.0
    %446 = vmatpush1.xpose.msra.mxu0 0.0
    %447 = vmatprep.subr.mxu0 0.0
    %448 = vmatpush1.xpose.msra.mxu0 0.0
    %449 = vmatprep.subr.mxu0 0.0
    %450 = vmatpush1.xpose.msra.mxu0 0.0
    %451 = vmatprep.subr.mxu0 0.0
    %452 = vmatpush1.xpose.msra.mxu0 0.0
    %453 = vmatprep.subr.mxu0 0.0
    %454 = vmatpush1.xpose.msra.mxu0 0.0
    %455 = vmatprep.subr.mxu0 0.0
    %456 = vmatpush1.xpose.msra.mxu0 0.0
    %457 = vmatprep.subr.mxu0 0.0
    %458 = vmatpush1.xpose.msra.mxu0 0.0
    %459 = vmatprep.mubr.f32.mxu0 0.0
    %460 = vmatmul.mubr.f32.gmra.mrb[0].mxu0 %v391
    %v461 = vpop.f32.mrb[0].mxu0
    %v462 = vadd.f32 0.0, %v461
    %v463 = vpop.f32.mrb[0].mxu0
    %464 = vdwg.mxu0
    %466 = vrot.lane.b32.xlu0 %v381, 96
    %v467 = vpop.permute.xlu0 %466
    %v469 = vsel %vm389, %v385, 0
    %v471 = vsel %vm389, %v467, 0
    %473 = vmatprep.subr.mxu0 0.0
    %474 = vmatpush1.xpose.msra.mxu0 %v471
    %475 = vmatprep.subr.mxu0 0.0
    %476 = vmatpush1.xpose.msra.mxu0 0.0
    %477 = vmatprep.subr.mxu0 0.0
    %478 = vmatpush1.xpose.msra.mxu0 0.0
    %479 = vmatprep.subr.mxu0 0.0
    %480 = vmatpush1.xpose.msra.mxu0 0.0
    %481 = vmatprep.subr.mxu0 0.0
    %482 = vmatpush1.xpose.msra.mxu0 0.0
    %483 = vmatprep.subr.mxu0 0.0
    %484 = vmatpush1.xpose.msra.mxu0 0.0
    %485 = vmatprep.subr.mxu0 0.0
    %486 = vmatpush1.xpose.msra.mxu0 0.0
    %487 = vmatprep.subr.mxu0 0.0
    %488 = vmatpush1.xpose.msra.mxu0 0.0
    %489 = vmatprep.subr.mxu0 0.0
    %490 = vmatpush1.xpose.msra.mxu0 0.0
    %491 = vmatprep.subr.mxu0 0.0
    %492 = vmatpush1.xpose.msra.mxu0 0.0
    %493 = vmatprep.subr.mxu0 0.0
    %494 = vmatpush1.xpose.msra.mxu0 0.0
    %495 = vmatprep.subr.mxu0 0.0
    %496 = vmatpush1.xpose.msra.mxu0 0.0
    %497 = vmatprep.subr.mxu0 0.0
    %498 = vmatpush1.xpose.msra.mxu0 0.0
    %499 = vmatprep.subr.mxu0 0.0
    %500 = vmatpush1.xpose.msra.mxu0 0.0
    %501 = vmatprep.subr.mxu0 0.0
    %502 = vmatpush1.xpose.msra.mxu0 0.0
    %503 = vmatprep.subr.mxu0 0.0
    %504 = vmatpush1.xpose.msra.mxu0 0.0
    %505 = vmatprep.subr.mxu0 0.0
    %506 = vmatpush1.xpose.msra.mxu0 0.0
    %507 = vmatprep.subr.mxu0 0.0
    %508 = vmatpush1.xpose.msra.mxu0 0.0
    %509 = vmatprep.subr.mxu0 0.0
    %510 = vmatpush1.xpose.msra.mxu0 0.0
    %511 = vmatprep.subr.mxu0 0.0
    %512 = vmatpush1.xpose.msra.mxu0 0.0
    %513 = vmatprep.subr.mxu0 0.0
    %514 = vmatpush1.xpose.msra.mxu0 0.0
    %515 = vmatprep.subr.mxu0 0.0
    %516 = vmatpush1.xpose.msra.mxu0 0.0
    %517 = vmatprep.subr.mxu0 0.0
    %518 = vmatpush1.xpose.msra.mxu0 0.0
    %519 = vmatprep.subr.mxu0 0.0
    %520 = vmatpush1.xpose.msra.mxu0 0.0
    %521 = vmatprep.subr.mxu0 0.0
    %522 = vmatpush1.xpose.msra.mxu0 0.0
    %523 = vmatprep.subr.mxu0 0.0
    %524 = vmatpush1.xpose.msra.mxu0 0.0
    %525 = vmatprep.subr.mxu0 0.0
    %526 = vmatpush1.xpose.msra.mxu0 0.0
    %527 = vmatprep.subr.mxu0 0.0
    %528 = vmatpush1.xpose.msra.mxu0 0.0
    %529 = vmatprep.subr.mxu0 0.0
    %530 = vmatpush1.xpose.msra.mxu0 0.0
    %531 = vmatprep.subr.mxu0 0.0
    %532 = vmatpush1.xpose.msra.mxu0 0.0
    %533 = vmatprep.subr.mxu0 0.0
    %534 = vmatpush1.xpose.msra.mxu0 0.0
    %535 = vmatprep.subr.mxu0 0.0
    %536 = vmatpush1.xpose.msra.mxu0 0.0
    %537 = vmatprep.mubr.f32.mxu0 0.0
    %538 = vmatmul.mubr.f32.gmra.mrb[0].mxu0 %v469
    %v539 = vpop.f32.mrb[0].mxu0
    %v540 = vadd.f32 0.0, %v539
    %v541 = vpop.f32.mrb[0].mxu0
    %542 = vdwg.mxu0
    %v543 = vlaneseq
    %v544 = vshrl.u32 %v543, 7
    %v545 = vsub.s32 0, %v544
    %v546 = vrot.slane %v91, %v545
    %v547 = vlaneseq
    %v548 = vshrl.u32 %v547, 7
    %v549 = vsub.s32 0, %v548
    %v550 = vrot.slane %v98, %v549
    %v553 = vmul.f32 %v462, %v546
    %v554 = vmul.f32 %v540, %v550
    %v555 = vsel %vm389, %v553, -inf
    %556 = vmax.xlane.f32.xlu0 %v555
    %v557 = vpop.xlane.xlu0 %556
    %v558 = vsel %vm389, %v554, -inf
    %559 = vmax.xlane.f32.xlu0 %v558
    %v560 = vpop.xlane.xlu0 %559
    %v561 = vsub.f32 %v553, %v557
    %v562 = vsub.f32 %v554, %v560
    %v563 = vmul.f32 %v561, 1.442695
    %v564 = vpow.pop %v563
    %v565 = vmul.f32 %v562, 1.442695
    %v566 = vpow.pop %v565
    %v567 = vmul.f32 %v564, %v546
    %v568 = vmul.f32 %v566, %v550
    %v569 = vsel %vm389, %v567, 0.0
    %570 = vadd.xlane.f32.xlu0 %v569
    %v571 = vpop.xlane.xlu0 %570
    %v572 = vsel %vm389, %v568, 0.0
    %573 = vadd.xlane.f32.xlu0 %v572
    %v574 = vpop.xlane.xlu0 %573
    %v575 = vadd.f32 %v571, 1e-13
    %v576 = vadd.f32 %v574, 1e-13
    %v577 = vrcp.pop %v575
    %v578 = vrcp.pop %v576
    %v579 = vmul.f32 %v567, %v577
    %v580 = vmul.f32 %v568, %v578
    %581 = vrot.lane.b32.xlu0 %v378, 64
    %v582 = vpop.permute.xlu0 %581
    %v585 = vsel %vm389, %v579, 0
    %587 = vmatprep.subr.mxu0 0.0
    %588 = vmatpush1.msra.mxu0 %v582
    %589 = vmatprep.subr.mxu0 0.0
    %590 = vmatpush1.msra.mxu0 0.0
    %591 = vmatprep.subr.mxu0 0.0
    %592 = vmatpush1.msra.mxu0 0.0
    %593 = vmatprep.subr.mxu0 0.0
    %594 = vmatpush1.msra.mxu0 0.0
    %595 = vmatprep.subr.mxu0 0.0
    %596 = vmatpush1.msra.mxu0 0.0
    %597 = vmatprep.subr.mxu0 0.0
    %598 = vmatpush1.msra.mxu0 0.0
    %599 = vmatprep.subr.mxu0 0.0
    %600 = vmatpush1.msra.mxu0 0.0
    %601 = vmatprep.subr.mxu0 0.0
    %602 = vmatpush1.msra.mxu0 0.0
    %603 = vmatprep.subr.mxu0 0.0
    %604 = vmatpush1.msra.mxu0 0.0
    %605 = vmatprep.subr.mxu0 0.0
    %606 = vmatpush1.msra.mxu0 0.0
    %607 = vmatprep.subr.mxu0 0.0
    %608 = vmatpush1.msra.mxu0 0.0
    %609 = vmatprep.subr.mxu0 0.0
    %610 = vmatpush1.msra.mxu0 0.0
    %611 = vmatprep.subr.mxu0 0.0
    %612 = vmatpush1.msra.mxu0 0.0
    %613 = vmatprep.subr.mxu0 0.0
    %614 = vmatpush1.msra.mxu0 0.0
    %615 = vmatprep.subr.mxu0 0.0
    %616 = vmatpush1.msra.mxu0 0.0
    %617 = vmatprep.subr.mxu0 0.0
    %618 = vmatpush1.msra.mxu0 0.0
    %619 = vmatprep.subr.mxu0 0.0
    %620 = vmatpush1.msra.mxu0 0.0
    %621 = vmatprep.subr.mxu0 0.0
    %622 = vmatpush1.msra.mxu0 0.0
    %623 = vmatprep.subr.mxu0 0.0
    %624 = vmatpush1.msra.mxu0 0.0
    %625 = vmatprep.subr.mxu0 0.0
    %626 = vmatpush1.msra.mxu0 0.0
    %627 = vmatprep.subr.mxu0 0.0
    %628 = vmatpush1.msra.mxu0 0.0
    %629 = vmatprep.subr.mxu0 0.0
    %630 = vmatpush1.msra.mxu0 0.0
    %631 = vmatprep.subr.mxu0 0.0
    %632 = vmatpush1.msra.mxu0 0.0
    %633 = vmatprep.subr.mxu0 0.0
    %634 = vmatpush1.msra.mxu0 0.0
    %635 = vmatprep.subr.mxu0 0.0
    %636 = vmatpush1.msra.mxu0 0.0
    %637 = vmatprep.subr.mxu0 0.0
    %638 = vmatpush1.msra.mxu0 0.0
    %639 = vmatprep.subr.mxu0 0.0
    %640 = vmatpush1.msra.mxu0 0.0
    %641 = vmatprep.subr.mxu0 0.0
    %642 = vmatpush1.msra.mxu0 0.0
    %643 = vmatprep.subr.mxu0 0.0
    %644 = vmatpush1.msra.mxu0 0.0
    %645 = vmatprep.subr.mxu0 0.0
    %646 = vmatpush1.msra.mxu0 0.0
    %647 = vmatprep.subr.mxu0 0.0
    %648 = vmatpush1.msra.mxu0 0.0
    %649 = vmatprep.subr.mxu0 0.0
    %650 = vmatpush1.msra.mxu0 0.0
    %651 = vmatprep.mubr.f32.mxu0 0.0
    %652 = vmatmul.mubr.f32.gmra.mrb[0].mxu0 %v585
    %v653 = vpop.f32.mrb[0].mxu0
    %v654 = vadd.f32 0.0, %v653
    %v655 = vpop.f32.mrb[0].mxu0
    %656 = vdwg.mxu0
    %657 = vrot.lane.b32.xlu0 %v381, 64
    %v658 = vpop.permute.xlu0 %657
    %v661 = vsel %vm389, %v580, 0
    %663 = vmatprep.subr.mxu0 0.0
    %664 = vmatpush1.msra.mxu0 %v658
    %665 = vmatprep.subr.mxu0 0.0
    %666 = vmatpush1.msra.mxu0 0.0
    %667 = vmatprep.subr.mxu0 0.0
    %668 = vmatpush1.msra.mxu0 0.0
    %669 = vmatprep.subr.mxu0 0.0
    %670 = vmatpush1.msra.mxu0 0.0
    %671 = vmatprep.subr.mxu0 0.0
    %672 = vmatpush1.msra.mxu0 0.0
    %673 = vmatprep.subr.mxu0 0.0
    %674 = vmatpush1.msra.mxu0 0.0
    %675 = vmatprep.subr.mxu0 0.0
    %676 = vmatpush1.msra.mxu0 0.0
    %677 = vmatprep.subr.mxu0 0.0
    %678 = vmatpush1.msra.mxu0 0.0
    %679 = vmatprep.subr.mxu0 0.0
    %680 = vmatpush1.msra.mxu0 0.0
    %681 = vmatprep.subr.mxu0 0.0
    %682 = vmatpush1.msra.mxu0 0.0
    %683 = vmatprep.subr.mxu0 0.0
    %684 = vmatpush1.msra.mxu0 0.0
    %685 = vmatprep.subr.mxu0 0.0
    %686 = vmatpush1.msra.mxu0 0.0
    %687 = vmatprep.subr.mxu0 0.0
    %688 = vmatpush1.msra.mxu0 0.0
    %689 = vmatprep.subr.mxu0 0.0
    %690 = vmatpush1.msra.mxu0 0.0
    %691 = vmatprep.subr.mxu0 0.0
    %692 = vmatpush1.msra.mxu0 0.0
    %693 = vmatprep.subr.mxu0 0.0
    %694 = vmatpush1.msra.mxu0 0.0
    %695 = vmatprep.subr.mxu0 0.0
    %696 = vmatpush1.msra.mxu0 0.0
    %697 = vmatprep.subr.mxu0 0.0
    %698 = vmatpush1.msra.mxu0 0.0
    %699 = vmatprep.subr.mxu0 0.0
    %700 = vmatpush1.msra.mxu0 0.0
    %701 = vmatprep.subr.mxu0 0.0
    %702 = vmatpush1.msra.mxu0 0.0
    %703 = vmatprep.subr.mxu0 0.0
    %704 = vmatpush1.msra.mxu0 0.0
    %705 = vmatprep.subr.mxu0 0.0
    %706 = vmatpush1.msra.mxu0 0.0
    %707 = vmatprep.subr.mxu0 0.0
    %708 = vmatpush1.msra.mxu0 0.0
    %709 = vmatprep.subr.mxu0 0.0
    %710 = vmatpush1.msra.mxu0 0.0
    %711 = vmatprep.subr.mxu0 0.0
    %712 = vmatpush1.msra.mxu0 0.0
    %713 = vmatprep.subr.mxu0 0.0
    %714 = vmatpush1.msra.mxu0 0.0
    %715 = vmatprep.subr.mxu0 0.0
    %716 = vmatpush1.msra.mxu0 0.0
    %717 = vmatprep.subr.mxu0 0.0
    %718 = vmatpush1.msra.mxu0 0.0
    %719 = vmatprep.subr.mxu0 0.0
    %720 = vmatpush1.msra.mxu0 0.0
    %721 = vmatprep.subr.mxu0 0.0
    %722 = vmatpush1.msra.mxu0 0.0
    %723 = vmatprep.subr.mxu0 0.0
    %724 = vmatpush1.msra.mxu0 0.0
    %725 = vmatprep.subr.mxu0 0.0
    %726 = vmatpush1.msra.mxu0 0.0
    %727 = vmatprep.mubr.f32.mxu0 0.0
    %728 = vmatmul.mubr.f32.gmra.mrb[0].mxu0 %v661
    %v729 = vpop.f32.mrb[0].mxu0
    %v730 = vadd.f32 0.0, %v729
    %v731 = vpop.f32.mrb[0].mxu0
    %732 = vdwg.mxu0
    %733 = vst.msk [vmem:[#allocation2] sm:$0xff] %vm389, %v654
    %734 = vst.msk [vmem:[#allocation2 + $0x8] sm:$0xff] %vm389, %v730
    %735 = vrot.lane.b32.xlu0 %v384, 120
    %v736 = vpop.permute.xlu0 %735
    %737 = vrot.lane.b32.xlu0 %v378, 88
    %v738 = vpop.permute.xlu0 %737
    %v739 = vsel %vm389, %v736, 0
    %v741 = vsel %vm389, %v738, 0
    %743 = vmatprep.subr.mxu0 0.0
    %744 = vmatpush1.xpose.msra.mxu0 %v741
    %745 = vmatprep.subr.mxu0 0.0
    %746 = vmatpush1.xpose.msra.mxu0 0.0
    %747 = vmatprep.subr.mxu0 0.0
    %748 = vmatpush1.xpose.msra.mxu0 0.0
    %749 = vmatprep.subr.mxu0 0.0
    %750 = vmatpush1.xpose.msra.mxu0 0.0
    %751 = vmatprep.subr.mxu0 0.0
    %752 = vmatpush1.xpose.msra.mxu0 0.0
    %753 = vmatprep.subr.mxu0 0.0
    %754 = vmatpush1.xpose.msra.mxu0 0.0
    %755 = vmatprep.subr.mxu0 0.0
    %756 = vmatpush1.xpose.msra.mxu0 0.0
    %757 = vmatprep.subr.mxu0 0.0
    %758 = vmatpush1.xpose.msra.mxu0 0.0
    %759 = vmatprep.subr.mxu0 0.0
    %760 = vmatpush1.xpose.msra.mxu0 0.0
    %761 = vmatprep.subr.mxu0 0.0
    %762 = vmatpush1.xpose.msra.mxu0 0.0
    %763 = vmatprep.subr.mxu0 0.0
    %764 = vmatpush1.xpose.msra.mxu0 0.0
    %765 = vmatprep.subr.mxu0 0.0
    %766 = vmatpush1.xpose.msra.mxu0 0.0
    %767 = vmatprep.subr.mxu0 0.0
    %768 = vmatpush1.xpose.msra.mxu0 0.0
    %769 = vmatprep.subr.mxu0 0.0
    %770 = vmatpush1.xpose.msra.mxu0 0.0
    %771 = vmatprep.subr.mxu0 0.0
    %772 = vmatpush1.xpose.msra.mxu0 0.0
    %773 = vmatprep.subr.mxu0 0.0
    %774 = vmatpush1.xpose.msra.mxu0 0.0
    %775 = vmatprep.subr.mxu0 0.0
    %776 = vmatpush1.xpose.msra.mxu0 0.0
    %777 = vmatprep.subr.mxu0 0.0
    %778 = vmatpush1.xpose.msra.mxu0 0.0
    %779 = vmatprep.subr.mxu0 0.0
    %780 = vmatpush1.xpose.msra.mxu0 0.0
    %781 = vmatprep.subr.mxu0 0.0
    %782 = vmatpush1.xpose.msra.mxu0 0.0
    %783 = vmatprep.subr.mxu0 0.0
    %784 = vmatpush1.xpose.msra.mxu0 0.0
    %785 = vmatprep.subr.mxu0 0.0
    %786 = vmatpush1.xpose.msra.mxu0 0.0
    %787 = vmatprep.subr.mxu0 0.0
    %788 = vmatpush1.xpose.msra.mxu0 0.0
    %789 = vmatprep.subr.mxu0 0.0
    %790 = vmatpush1.xpose.msra.mxu0 0.0
    %791 = vmatprep.subr.mxu0 0.0
    %792 = vmatpush1.xpose.msra.mxu0 0.0
    %793 = vmatprep.subr.mxu0 0.0
    %794 = vmatpush1.xpose.msra.mxu0 0.0
    %795 = vmatprep.subr.mxu0 0.0
    %796 = vmatpush1.xpose.msra.mxu0 0.0
    %797 = vmatprep.subr.mxu0 0.0
    %798 = vmatpush1.xpose.msra.mxu0 0.0
    %799 = vmatprep.subr.mxu0 0.0
    %800 = vmatpush1.xpose.msra.mxu0 0.0
    %801 = vmatprep.subr.mxu0 0.0
    %802 = vmatpush1.xpose.msra.mxu0 0.0
    %803 = vmatprep.subr.mxu0 0.0
    %804 = vmatpush1.xpose.msra.mxu0 0.0
    %805 = vmatprep.subr.mxu0 0.0
    %806 = vmatpush1.xpose.msra.mxu0 0.0
    %807 = vmatprep.mubr.f32.mxu0 0.0
    %808 = vmatmul.mubr.f32.gmra.mrb[0].mxu0 %v739
    %v809 = vpop.f32.mrb[0].mxu0
    %v810 = vadd.f32 0.0, %v809
    %v811 = vpop.f32.mrb[0].mxu0
    %812 = vdwg.mxu0
    %813 = vrot.lane.b32.xlu0 %v385, 120
    %v814 = vpop.permute.xlu0 %813
    %815 = vrot.lane.b32.xlu0 %v381, 88
    %v816 = vpop.permute.xlu0 %815
    %v817 = vsel %vm389, %v814, 0
    %v819 = vsel %vm389, %v816, 0
    %821 = vmatprep.subr.mxu0 0.0
    %822 = vmatpush1.xpose.msra.mxu0 %v819
    %823 = vmatprep.subr.mxu0 0.0
    %824 = vmatpush1.xpose.msra.mxu0 0.0
    %825 = vmatprep.subr.mxu0 0.0
    %826 = vmatpush1.xpose.msra.mxu0 0.0
    %827 = vmatprep.subr.mxu0 0.0
    %828 = vmatpush1.xpose.msra.mxu0 0.0
    %829 = vmatprep.subr.mxu0 0.0
    %830 = vmatpush1.xpose.msra.mxu0 0.0
    %831 = vmatprep.subr.mxu0 0.0
    %832 = vmatpush1.xpose.msra.mxu0 0.0
    %833 = vmatprep.subr.mxu0 0.0
    %834 = vmatpush1.xpose.msra.mxu0 0.0
    %835 = vmatprep.subr.mxu0 0.0
    %836 = vmatpush1.xpose.msra.mxu0 0.0
    %837 = vmatprep.subr.mxu0 0.0
    %838 = vmatpush1.xpose.msra.mxu0 0.0
    %839 = vmatprep.subr.mxu0 0.0
    %840 = vmatpush1.xpose.msra.mxu0 0.0
    %841 = vmatprep.subr.mxu0 0.0
    %842 = vmatpush1.xpose.msra.mxu0 0.0
    %843 = vmatprep.subr.mxu0 0.0
    %844 = vmatpush1.xpose.msra.mxu0 0.0
    %845 = vmatprep.subr.mxu0 0.0
    %846 = vmatpush1.xpose.msra.mxu0 0.0
    %847 = vmatprep.subr.mxu0 0.0
    %848 = vmatpush1.xpose.msra.mxu0 0.0
    %849 = vmatprep.subr.mxu0 0.0
    %850 = vmatpush1.xpose.msra.mxu0 0.0
    %851 = vmatprep.subr.mxu0 0.0
    %852 = vmatpush1.xpose.msra.mxu0 0.0
    %853 = vmatprep.subr.mxu0 0.0
    %854 = vmatpush1.xpose.msra.mxu0 0.0
    %855 = vmatprep.subr.mxu0 0.0
    %856 = vmatpush1.xpose.msra.mxu0 0.0
    %857 = vmatprep.subr.mxu0 0.0
    %858 = vmatpush1.xpose.msra.mxu0 0.0
    %859 = vmatprep.subr.mxu0 0.0
    %860 = vmatpush1.xpose.msra.mxu0 0.0
    %861 = vmatprep.subr.mxu0 0.0
    %862 = vmatpush1.xpose.msra.mxu0 0.0
    %863 = vmatprep.subr.mxu0 0.0
    %864 = vmatpush1.xpose.msra.mxu0 0.0
    %865 = vmatprep.subr.mxu0 0.0
    %866 = vmatpush1.xpose.msra.mxu0 0.0
    %867 = vmatprep.subr.mxu0 0.0
    %868 = vmatpush1.xpose.msra.mxu0 0.0
    %869 = vmatprep.subr.mxu0 0.0
    %870 = vmatpush1.xpose.msra.mxu0 0.0
    %871 = vmatprep.subr.mxu0 0.0
    %872 = vmatpush1.xpose.msra.mxu0 0.0
    %873 = vmatprep.subr.mxu0 0.0
    %874 = vmatpush1.xpose.msra.mxu0 0.0
    %875 = vmatprep.subr.mxu0 0.0
    %876 = vmatpush1.xpose.msra.mxu0 0.0
    %877 = vmatprep.subr.mxu0 0.0
    %878 = vmatpush1.xpose.msra.mxu0 0.0
    %879 = vmatprep.subr.mxu0 0.0
    %880 = vmatpush1.xpose.msra.mxu0 0.0
    %881 = vmatprep.subr.mxu0 0.0
    %882 = vmatpush1.xpose.msra.mxu0 0.0
    %883 = vmatprep.subr.mxu0 0.0
    %884 = vmatpush1.xpose.msra.mxu0 0.0
    %885 = vmatprep.mubr.f32.mxu0 0.0
    %886 = vmatmul.mubr.f32.gmra.mrb[0].mxu0 %v817
    %v887 = vpop.f32.mrb[0].mxu0
    %v888 = vadd.f32 0.0, %v887
    %v889 = vpop.f32.mrb[0].mxu0
    %890 = vdwg.mxu0
    %v891 = vmul.f32 %v810, %v546
    %v892 = vmul.f32 %v888, %v550
    %v893 = vsel %vm389, %v891, -inf
    %894 = vmax.xlane.f32.xlu0 %v893
    %v895 = vpop.xlane.xlu0 %894
    %v896 = vsel %vm389, %v892, -inf
    %897 = vmax.xlane.f32.xlu0 %v896
    %v898 = vpop.xlane.xlu0 %897
    %v899 = vsub.f32 %v891, %v895
    %v900 = vsub.f32 %v892, %v898
    %v901 = vmul.f32 %v899, 1.442695
    %v902 = vpow.pop %v901
    %v903 = vmul.f32 %v900, 1.442695
    %v904 = vpow.pop %v903
    %v905 = vmul.f32 %v902, %v546
    %v906 = vmul.f32 %v904, %v550
    %v907 = vsel %vm389, %v905, 0.0
    %908 = vadd.xlane.f32.xlu0 %v907
    %v909 = vpop.xlane.xlu0 %908
    %v910 = vsel %vm389, %v906, 0.0
    %911 = vadd.xlane.f32.xlu0 %v910
    %v912 = vpop.xlane.xlu0 %911
    %v913 = vadd.f32 %v909, 1e-13
    %v914 = vadd.f32 %v912, 1e-13
    %v915 = vrcp.pop %v913
    %v916 = vrcp.pop %v914
    %v917 = vmul.f32 %v905, %v915
    %v918 = vmul.f32 %v906, %v916
    %919 = vrot.lane.b32.xlu0 %v378, 56
    %v920 = vpop.permute.xlu0 %919
    %v923 = vsel %vm389, %v917, 0
    %925 = vmatprep.subr.mxu0 0.0
    %926 = vmatpush1.msra.mxu0 %v920
    %927 = vmatprep.subr.mxu0 0.0
    %928 = vmatpush1.msra.mxu0 0.0
    %929 = vmatprep.subr.mxu0 0.0
    %930 = vmatpush1.msra.mxu0 0.0
    %931 = vmatprep.subr.mxu0 0.0
    %932 = vmatpush1.msra.mxu0 0.0
    %933 = vmatprep.subr.mxu0 0.0
    %934 = vmatpush1.msra.mxu0 0.0
    %935 = vmatprep.subr.mxu0 0.0
    %936 = vmatpush1.msra.mxu0 0.0
    %937 = vmatprep.subr.mxu0 0.0
    %938 = vmatpush1.msra.mxu0 0.0
    %939 = vmatprep.subr.mxu0 0.0
    %940 = vmatpush1.msra.mxu0 0.0
    %941 = vmatprep.subr.mxu0 0.0
    %942 = vmatpush1.msra.mxu0 0.0
    %943 = vmatprep.subr.mxu0 0.0
    %944 = vmatpush1.msra.mxu0 0.0
    %945 = vmatprep.subr.mxu0 0.0
    %946 = vmatpush1.msra.mxu0 0.0
    %947 = vmatprep.subr.mxu0 0.0
    %948 = vmatpush1.msra.mxu0 0.0
    %949 = vmatprep.subr.mxu0 0.0
    %950 = vmatpush1.msra.mxu0 0.0
    %951 = vmatprep.subr.mxu0 0.0
    %952 = vmatpush1.msra.mxu0 0.0
    %953 = vmatprep.subr.mxu0 0.0
    %954 = vmatpush1.msra.mxu0 0.0
    %955 = vmatprep.subr.mxu0 0.0
    %956 = vmatpush1.msra.mxu0 0.0
    %957 = vmatprep.subr.mxu0 0.0
    %958 = vmatpush1.msra.mxu0 0.0
    %959 = vmatprep.subr.mxu0 0.0
    %960 = vmatpush1.msra.mxu0 0.0
    %961 = vmatprep.subr.mxu0 0.0
    %962 = vmatpush1.msra.mxu0 0.0
    %963 = vmatprep.subr.mxu0 0.0
    %964 = vmatpush1.msra.mxu0 0.0
    %965 = vmatprep.subr.mxu0 0.0
    %966 = vmatpush1.msra.mxu0 0.0
    %967 = vmatprep.subr.mxu0 0.0
    %968 = vmatpush1.msra.mxu0 0.0
    %969 = vmatprep.subr.mxu0 0.0
    %970 = vmatpush1.msra.mxu0 0.0
    %971 = vmatprep.subr.mxu0 0.0
    %972 = vmatpush1.msra.mxu0 0.0
    %973 = vmatprep.subr.mxu0 0.0
    %974 = vmatpush1.msra.mxu0 0.0
    %975 = vmatprep.subr.mxu0 0.0
    %976 = vmatpush1.msra.mxu0 0.0
    %977 = vmatprep.subr.mxu0 0.0
    %978 = vmatpush1.msra.mxu0 0.0
    %979 = vmatprep.subr.mxu0 0.0
    %980 = vmatpush1.msra.mxu0 0.0
    %981 = vmatprep.subr.mxu0 0.0
    %982 = vmatpush1.msra.mxu0 0.0
    %983 = vmatprep.subr.mxu0 0.0
    %984 = vmatpush1.msra.mxu0 0.0
    %985 = vmatprep.subr.mxu0 0.0
    %986 = vmatpush1.msra.mxu0 0.0
    %987 = vmatprep.subr.mxu0 0.0
    %988 = vmatpush1.msra.mxu0 0.0
    %989 = vmatprep.mubr.f32.mxu0 0.0
    %990 = vmatmul.mubr.f32.gmra.mrb[0].mxu0 %v923
    %v991 = vpop.f32.mrb[0].mxu0
    %v992 = vadd.f32 0.0, %v991
    %v993 = vpop.f32.mrb[0].mxu0
    %994 = vdwg.mxu0
    %995 = vrot.lane.b32.xlu0 %v381, 56
    %v996 = vpop.permute.xlu0 %995
    %v999 = vsel %vm389, %v918, 0
    %1001 = vmatprep.subr.mxu0 0.0
    %1002 = vmatpush1.msra.mxu0 %v996
    %1003 = vmatprep.subr.mxu0 0.0
    %1004 = vmatpush1.msra.mxu0 0.0
    %1005 = vmatprep.subr.mxu0 0.0
    %1006 = vmatpush1.msra.mxu0 0.0
    %1007 = vmatprep.subr.mxu0 0.0
    %1008 = vmatpush1.msra.mxu0 0.0
    %1009 = vmatprep.subr.mxu0 0.0
    %1010 = vmatpush1.msra.mxu0 0.0
    %1011 = vmatprep.subr.mxu0 0.0
    %1012 = vmatpush1.msra.mxu0 0.0
    %1013 = vmatprep.subr.mxu0 0.0
    %1014 = vmatpush1.msra.mxu0 0.0
    %1015 = vmatprep.subr.mxu0 0.0
    %1016 = vmatpush1.msra.mxu0 0.0
    %1017 = vmatprep.subr.mxu0 0.0
    %1018 = vmatpush1.msra.mxu0 0.0
    %1019 = vmatprep.subr.mxu0 0.0
    %1020 = vmatpush1.msra.mxu0 0.0
    %1021 = vmatprep.subr.mxu0 0.0
    %1022 = vmatpush1.msra.mxu0 0.0
    %1023 = vmatprep.subr.mxu0 0.0
    %1024 = vmatpush1.msra.mxu0 0.0
    %1025 = vmatprep.subr.mxu0 0.0
    %1026 = vmatpush1.msra.mxu0 0.0
    %1027 = vmatprep.subr.mxu0 0.0
    %1028 = vmatpush1.msra.mxu0 0.0
    %1029 = vmatprep.subr.mxu0 0.0
    %1030 = vmatpush1.msra.mxu0 0.0
    %1031 = vmatprep.subr.mxu0 0.0
    %1032 = vmatpush1.msra.mxu0 0.0
    %1033 = vmatprep.subr.mxu0 0.0
    %1034 = vmatpush1.msra.mxu0 0.0
    %1035 = vmatprep.subr.mxu0 0.0
    %1036 = vmatpush1.msra.mxu0 0.0
    %1037 = vmatprep.subr.mxu0 0.0
    %1038 = vmatpush1.msra.mxu0 0.0
    %1039 = vmatprep.subr.mxu0 0.0
    %1040 = vmatpush1.msra.mxu0 0.0
    %1041 = vmatprep.subr.mxu0 0.0
    %1042 = vmatpush1.msra.mxu0 0.0
    %1043 = vmatprep.subr.mxu0 0.0
    %1044 = vmatpush1.msra.mxu0 0.0
    %1045 = vmatprep.subr.mxu0 0.0
    %1046 = vmatpush1.msra.mxu0 0.0
    %1047 = vmatprep.subr.mxu0 0.0
    %1048 = vmatpush1.msra.mxu0 0.0
    %1049 = vmatprep.subr.mxu0 0.0
    %1050 = vmatpush1.msra.mxu0 0.0
    %1051 = vmatprep.subr.mxu0 0.0
    %1052 = vmatpush1.msra.mxu0 0.0
    %1053 = vmatprep.subr.mxu0 0.0
    %1054 = vmatpush1.msra.mxu0 0.0
    %1055 = vmatprep.subr.mxu0 0.0
    %1056 = vmatpush1.msra.mxu0 0.0
    %1057 = vmatprep.subr.mxu0 0.0
    %1058 = vmatpush1.msra.mxu0 0.0
    %1059 = vmatprep.subr.mxu0 0.0
    %1060 = vmatpush1.msra.mxu0 0.0
    %1061 = vmatprep.subr.mxu0 0.0
    %1062 = vmatpush1.msra.mxu0 0.0
    %1063 = vmatprep.subr.mxu0 0.0
    %1064 = vmatpush1.msra.mxu0 0.0
    %1065 = vmatprep.mubr.f32.mxu0 0.0
    %1066 = vmatmul.mubr.f32.gmra.mrb[0].mxu0 %v999
    %v1067 = vpop.f32.mrb[0].mxu0
    %v1068 = vadd.f32 0.0, %v1067
    %v1069 = vpop.f32.mrb[0].mxu0
    %1070 = vdwg.mxu0
    %1073 = vrot.lane.b32.xlu0 %v992, 8
    %v1074 = vpop.permute.xlu0 %1073
    %1075 = vrot.lane.b32.xlu0 %v1068, 8
    %v1076 = vpop.permute.xlu0 %1075
    %vm1079 = vcmask 130112
    %1080 = vst.msk [vmem:[#allocation2] sm:$0xff] %vm1079, %v1074
    %1081 = vst.msk [vmem:[#allocation2 + $0x8] sm:$0xff] %vm1079, %v1076
    %1082 = vrot.lane.b32.xlu0 %v384, 112
    %v1083 = vpop.permute.xlu0 %1082
    %1084 = vrot.lane.b32.xlu0 %v378, 80
    %v1085 = vpop.permute.xlu0 %1084
    %v1086 = vsel %vm389, %v1083, 0
    %v1088 = vsel %vm389, %v1085, 0
    %1090 = vmatprep.subr.mxu0 0.0
    %1091 = vmatpush1.xpose.msra.mxu0 %v1088
    %1092 = vmatprep.subr.mxu0 0.0
    %1093 = vmatpush1.xpose.msra.mxu0 0.0
    %1094 = vmatprep.subr.mxu0 0.0
    %1095 = vmatpush1.xpose.msra.mxu0 0.0
    %1096 = vmatprep.subr.mxu0 0.0
    %1097 = vmatpush1.xpose.msra.mxu0 0.0
    %1098 = vmatprep.subr.mxu0 0.0
    %1099 = vmatpush1.xpose.msra.mxu0 0.0
    %1100 = vmatprep.subr.mxu0 0.0
    %1101 = vmatpush1.xpose.msra.mxu0 0.0
    %1102 = vmatprep.subr.mxu0 0.0
    %1103 = vmatpush1.xpose.msra.mxu0 0.0
    %1104 = vmatprep.subr.mxu0 0.0
    %1105 = vmatpush1.xpose.msra.mxu0 0.0
    %1106 = vmatprep.subr.mxu0 0.0
    %1107 = vmatpush1.xpose.msra.mxu0 0.0
    %1108 = vmatprep.subr.mxu0 0.0
    %1109 = vmatpush1.xpose.msra.mxu0 0.0
    %1110 = vmatprep.subr.mxu0 0.0
    %1111 = vmatpush1.xpose.msra.mxu0 0.0
    %1112 = vmatprep.subr.mxu0 0.0
    %1113 = vmatpush1.xpose.msra.mxu0 0.0
    %1114 = vmatprep.subr.mxu0 0.0
    %1115 = vmatpush1.xpose.msra.mxu0 0.0
    %1116 = vmatprep.subr.mxu0 0.0
    %1117 = vmatpush1.xpose.msra.mxu0 0.0
    %1118 = vmatprep.subr.mxu0 0.0
    %1119 = vmatpush1.xpose.msra.mxu0 0.0
    %1120 = vmatprep.subr.mxu0 0.0
    %1121 = vmatpush1.xpose.msra.mxu0 0.0
    %1122 = vmatprep.subr.mxu0 0.0
    %1123 = vmatpush1.xpose.msra.mxu0 0.0
    %1124 = vmatprep.subr.mxu0 0.0
    %1125 = vmatpush1.xpose.msra.mxu0 0.0
    %1126 = vmatprep.subr.mxu0 0.0
    %1127 = vmatpush1.xpose.msra.mxu0 0.0
    %1128 = vmatprep.subr.mxu0 0.0
    %1129 = vmatpush1.xpose.msra.mxu0 0.0
    %1130 = vmatprep.subr.mxu0 0.0
    %1131 = vmatpush1.xpose.msra.mxu0 0.0
    %1132 = vmatprep.subr.mxu0 0.0
    %1133 = vmatpush1.xpose.msra.mxu0 0.0
    %1134 = vmatprep.subr.mxu0 0.0
    %1135 = vmatpush1.xpose.msra.mxu0 0.0
    %1136 = vmatprep.subr.mxu0 0.0
    %1137 = vmatpush1.xpose.msra.mxu0 0.0
    %1138 = vmatprep.subr.mxu0 0.0
    %1139 = vmatpush1.xpose.msra.mxu0 0.0
    %1140 = vmatprep.subr.mxu0 0.0
    %1141 = vmatpush1.xpose.msra.mxu0 0.0
    %1142 = vmatprep.subr.mxu0 0.0
    %1143 = vmatpush1.xpose.msra.mxu0 0.0
    %1144 = vmatprep.subr.mxu0 0.0
    %1145 = vmatpush1.xpose.msra.mxu0 0.0
    %1146 = vmatprep.subr.mxu0 0.0
    %1147 = vmatpush1.xpose.msra.mxu0 0.0
    %1148 = vmatprep.subr.mxu0 0.0
    %1149 = vmatpush1.xpose.msra.mxu0 0.0
    %1150 = vmatprep.subr.mxu0 0.0
    %1151 = vmatpush1.xpose.msra.mxu0 0.0
    %1152 = vmatprep.subr.mxu0 0.0
    %1153 = vmatpush1.xpose.msra.mxu0 0.0
    %1154 = vmatprep.mubr.f32.mxu0 0.0
    %1155 = vmatmul.mubr.f32.gmra.mrb[0].mxu0 %v1086
    %v1156 = vpop.f32.mrb[0].mxu0
    %v1157 = vadd.f32 0.0, %v1156
    %v1158 = vpop.f32.mrb[0].mxu0
    %1159 = vdwg.mxu0
    %1160 = vrot.lane.b32.xlu0 %v385, 112
    %v1161 = vpop.permute.xlu0 %1160
    %1162 = vrot.lane.b32.xlu0 %v381, 80
    %v1163 = vpop.permute.xlu0 %1162
    %v1164 = vsel %vm389, %v1161, 0
    %v1166 = vsel %vm389, %v1163, 0
    %1168 = vmatprep.subr.mxu0 0.0
    %1169 = vmatpush1.xpose.msra.mxu0 %v1166
    %1170 = vmatprep.subr.mxu0 0.0
    %1171 = vmatpush1.xpose.msra.mxu0 0.0
    %1172 = vmatprep.subr.mxu0 0.0
    %1173 = vmatpush1.xpose.msra.mxu0 0.0
    %1174 = vmatprep.subr.mxu0 0.0
    %1175 = vmatpush1.xpose.msra.mxu0 0.0
    %1176 = vmatprep.subr.mxu0 0.0
    %1177 = vmatpush1.xpose.msra.mxu0 0.0
    %1178 = vmatprep.subr.mxu0 0.0
    %1179 = vmatpush1.xpose.msra.mxu0 0.0
    %1180 = vmatprep.subr.mxu0 0.0
    %1181 = vmatpush1.xpose.msra.mxu0 0.0
    %1182 = vmatprep.subr.mxu0 0.0
    %1183 = vmatpush1.xpose.msra.mxu0 0.0
    %1184 = vmatprep.subr.mxu0 0.0
    %1185 = vmatpush1.xpose.msra.mxu0 0.0
    %1186 = vmatprep.subr.mxu0 0.0
    %1187 = vmatpush1.xpose.msra.mxu0 0.0
    %1188 = vmatprep.subr.mxu0 0.0
    %1189 = vmatpush1.xpose.msra.mxu0 0.0
    %1190 = vmatprep.subr.mxu0 0.0
    %1191 = vmatpush1.xpose.msra.mxu0 0.0
    %1192 = vmatprep.subr.mxu0 0.0
    %1193 = vmatpush1.xpose.msra.mxu0 0.0
    %1194 = vmatprep.subr.mxu0 0.0
    %1195 = vmatpush1.xpose.msra.mxu0 0.0
    %1196 = vmatprep.subr.mxu0 0.0
    %1197 = vmatpush1.xpose.msra.mxu0 0.0
    %1198 = vmatprep.subr.mxu0 0.0
    %1199 = vmatpush1.xpose.msra.mxu0 0.0
    %1200 = vmatprep.subr.mxu0 0.0
    %1201 = vmatpush1.xpose.msra.mxu0 0.0
    %1202 = vmatprep.subr.mxu0 0.0
    %1203 = vmatpush1.xpose.msra.mxu0 0.0
    %1204 = vmatprep.subr.mxu0 0.0
    %1205 = vmatpush1.xpose.msra.mxu0 0.0
    %1206 = vmatprep.subr.mxu0 0.0
    %1207 = vmatpush1.xpose.msra.mxu0 0.0
    %1208 = vmatprep.subr.mxu0 0.0
    %1209 = vmatpush1.xpose.msra.mxu0 0.0
    %1210 = vmatprep.subr.mxu0 0.0
    %1211 = vmatpush1.xpose.msra.mxu0 0.0
    %1212 = vmatprep.subr.mxu0 0.0
    %1213 = vmatpush1.xpose.msra.mxu0 0.0
    %1214 = vmatprep.subr.mxu0 0.0
    %1215 = vmatpush1.xpose.msra.mxu0 0.0
    %1216 = vmatprep.subr.mxu0 0.0
    %1217 = vmatpush1.xpose.msra.mxu0 0.0
    %1218 = vmatprep.subr.mxu0 0.0
    %1219 = vmatpush1.xpose.msra.mxu0 0.0
    %1220 = vmatprep.subr.mxu0 0.0
    %1221 = vmatpush1.xpose.msra.mxu0 0.0
    %1222 = vmatprep.subr.mxu0 0.0
    %1223 = vmatpush1.xpose.msra.mxu0 0.0
    %1224 = vmatprep.subr.mxu0 0.0
    %1225 = vmatpush1.xpose.msra.mxu0 0.0
    %1226 = vmatprep.subr.mxu0 0.0
    %1227 = vmatpush1.xpose.msra.mxu0 0.0
    %1228 = vmatprep.subr.mxu0 0.0
    %1229 = vmatpush1.xpose.msra.mxu0 0.0
    %1230 = vmatprep.subr.mxu0 0.0
    %1231 = vmatpush1.xpose.msra.mxu0 0.0
    %1232 = vmatprep.mubr.f32.mxu0 0.0
    %1233 = vmatmul.mubr.f32.gmra.mrb[0].mxu0 %v1164
    %v1234 = vpop.f32.mrb[0].mxu0
    %v1235 = vadd.f32 0.0, %v1234
    %v1236 = vpop.f32.mrb[0].mxu0
    %1237 = vdwg.mxu0
    %v1238 = vmul.f32 %v1157, %v546
    %v1239 = vmul.f32 %v1235, %v550
    %v1240 = vsel %vm389, %v1238, -inf
    %1241 = vmax.xlane.f32.xlu0 %v1240
    %v1242 = vpop.xlane.xlu0 %1241
    %v1243 = vsel %vm389, %v1239, -inf
    %1244 = vmax.xlane.f32.xlu0 %v1243
    %v1245 = vpop.xlane.xlu0 %1244
    %v1246 = vsub.f32 %v1238, %v1242
    %v1247 = vsub.f32 %v1239, %v1245
    %v1248 = vmul.f32 %v1246, 1.442695
    %v1249 = vpow.pop %v1248
    %v1250 = vmul.f32 %v1247, 1.442695
    %v1251 = vpow.pop %v1250
    %v1252 = vmul.f32 %v1249, %v546
    %v1253 = vmul.f32 %v1251, %v550
    %v1254 = vsel %vm389, %v1252, 0.0
    %1255 = vadd.xlane.f32.xlu0 %v1254
    %v1256 = vpop.xlane.xlu0 %1255
    %v1257 = vsel %vm389, %v1253, 0.0
    %1258 = vadd.xlane.f32.xlu0 %v1257
    %v1259 = vpop.xlane.xlu0 %1258
    %v1260 = vadd.f32 %v1256, 1e-13
    %v1261 = vadd.f32 %v1259, 1e-13
    %v1262 = vrcp.pop %v1260
    %v1263 = vrcp.pop %v1261
    %v1264 = vmul.f32 %v1252, %v1262
    %v1265 = vmul.f32 %v1253, %v1263
    %1266 = vrot.lane.b32.xlu0 %v378, 48
    %v1267 = vpop.permute.xlu0 %1266
    %v1270 = vsel %vm389, %v1264, 0
    %1272 = vmatprep.subr.mxu0 0.0
    %1273 = vmatpush1.msra.mxu0 %v1267
    %1274 = vmatprep.subr.mxu0 0.0
    %1275 = vmatpush1.msra.mxu0 0.0
    %1276 = vmatprep.subr.mxu0 0.0
    %1277 = vmatpush1.msra.mxu0 0.0
    %1278 = vmatprep.subr.mxu0 0.0
    %1279 = vmatpush1.msra.mxu0 0.0
    %1280 = vmatprep.subr.mxu0 0.0
    %1281 = vmatpush1.msra.mxu0 0.0
    %1282 = vmatprep.subr.mxu0 0.0
    %1283 = vmatpush1.msra.mxu0 0.0
    %1284 = vmatprep.subr.mxu0 0.0
    %1285 = vmatpush1.msra.mxu0 0.0
    %1286 = vmatprep.subr.mxu0 0.0
    %1287 = vmatpush1.msra.mxu0 0.0
    %1288 = vmatprep.subr.mxu0 0.0
    %1289 = vmatpush1.msra.mxu0 0.0
    %1290 = vmatprep.subr.mxu0 0.0
    %1291 = vmatpush1.msra.mxu0 0.0
    %1292 = vmatprep.subr.mxu0 0.0
    %1293 = vmatpush1.msra.mxu0 0.0
    %1294 = vmatprep.subr.mxu0 0.0
    %1295 = vmatpush1.msra.mxu0 0.0
    %1296 = vmatprep.subr.mxu0 0.0
    %1297 = vmatpush1.msra.mxu0 0.0
    %1298 = vmatprep.subr.mxu0 0.0
    %1299 = vmatpush1.msra.mxu0 0.0
    %1300 = vmatprep.subr.mxu0 0.0
    %1301 = vmatpush1.msra.mxu0 0.0
    %1302 = vmatprep.subr.mxu0 0.0
    %1303 = vmatpush1.msra.mxu0 0.0
    %1304 = vmatprep.subr.mxu0 0.0
    %1305 = vmatpush1.msra.mxu0 0.0
    %1306 = vmatprep.subr.mxu0 0.0
    %1307 = vmatpush1.msra.mxu0 0.0
    %1308 = vmatprep.subr.mxu0 0.0
    %1309 = vmatpush1.msra.mxu0 0.0
    %1310 = vmatprep.subr.mxu0 0.0
    %1311 = vmatpush1.msra.mxu0 0.0
    %1312 = vmatprep.subr.mxu0 0.0
    %1313 = vmatpush1.msra.mxu0 0.0
    %1314 = vmatprep.subr.mxu0 0.0
    %1315 = vmatpush1.msra.mxu0 0.0
    %1316 = vmatprep.subr.mxu0 0.0
    %1317 = vmatpush1.msra.mxu0 0.0
    %1318 = vmatprep.subr.mxu0 0.0
    %1319 = vmatpush1.msra.mxu0 0.0
    %1320 = vmatprep.subr.mxu0 0.0
    %1321 = vmatpush1.msra.mxu0 0.0
    %1322 = vmatprep.subr.mxu0 0.0
    %1323 = vmatpush1.msra.mxu0 0.0
    %1324 = vmatprep.subr.mxu0 0.0
    %1325 = vmatpush1.msra.mxu0 0.0
    %1326 = vmatprep.subr.mxu0 0.0
    %1327 = vmatpush1.msra.mxu0 0.0
    %1328 = vmatprep.subr.mxu0 0.0
    %1329 = vmatpush1.msra.mxu0 0.0
    %1330 = vmatprep.subr.mxu0 0.0
    %1331 = vmatpush1.msra.mxu0 0.0
    %1332 = vmatprep.subr.mxu0 0.0
    %1333 = vmatpush1.msra.mxu0 0.0
    %1334 = vmatprep.subr.mxu0 0.0
    %1335 = vmatpush1.msra.mxu0 0.0
    %1336 = vmatprep.mubr.f32.mxu0 0.0
    %1337 = vmatmul.mubr.f32.gmra.mrb[0].mxu0 %v1270
    %v1338 = vpop.f32.mrb[0].mxu0
    %v1339 = vadd.f32 0.0, %v1338
    %v1340 = vpop.f32.mrb[0].mxu0
    %1341 = vdwg.mxu0
    %1342 = vrot.lane.b32.xlu0 %v381, 48
    %v1343 = vpop.permute.xlu0 %1342
    %v1346 = vsel %vm389, %v1265, 0
    %1348 = vmatprep.subr.mxu0 0.0
    %1349 = vmatpush1.msra.mxu0 %v1343
    %1350 = vmatprep.subr.mxu0 0.0
    %1351 = vmatpush1.msra.mxu0 0.0
    %1352 = vmatprep.subr.mxu0 0.0
    %1353 = vmatpush1.msra.mxu0 0.0
    %1354 = vmatprep.subr.mxu0 0.0
    %1355 = vmatpush1.msra.mxu0 0.0
    %1356 = vmatprep.subr.mxu0 0.0
    %1357 = vmatpush1.msra.mxu0 0.0
    %1358 = vmatprep.subr.mxu0 0.0
    %1359 = vmatpush1.msra.mxu0 0.0
    %1360 = vmatprep.subr.mxu0 0.0
    %1361 = vmatpush1.msra.mxu0 0.0
    %1362 = vmatprep.subr.mxu0 0.0
    %1363 = vmatpush1.msra.mxu0 0.0
    %1364 = vmatprep.subr.mxu0 0.0
    %1365 = vmatpush1.msra.mxu0 0.0
    %1366 = vmatprep.subr.mxu0 0.0
    %1367 = vmatpush1.msra.mxu0 0.0
    %1368 = vmatprep.subr.mxu0 0.0
    %1369 = vmatpush1.msra.mxu0 0.0
    %1370 = vmatprep.subr.mxu0 0.0
    %1371 = vmatpush1.msra.mxu0 0.0
    %1372 = vmatprep.subr.mxu0 0.0
    %1373 = vmatpush1.msra.mxu0 0.0
    %1374 = vmatprep.subr.mxu0 0.0
    %1375 = vmatpush1.msra.mxu0 0.0
    %1376 = vmatprep.subr.mxu0 0.0
    %1377 = vmatpush1.msra.mxu0 0.0
    %1378 = vmatprep.subr.mxu0 0.0
    %1379 = vmatpush1.msra.mxu0 0.0
    %1380 = vmatprep.subr.mxu0 0.0
    %1381 = vmatpush1.msra.mxu0 0.0
    %1382 = vmatprep.subr.mxu0 0.0
    %1383 = vmatpush1.msra.mxu0 0.0
    %1384 = vmatprep.subr.mxu0 0.0
    %1385 = vmatpush1.msra.mxu0 0.0
    %1386 = vmatprep.subr.mxu0 0.0
    %1387 = vmatpush1.msra.mxu0 0.0
    %1388 = vmatprep.subr.mxu0 0.0
    %1389 = vmatpush1.msra.mxu0 0.0
    %1390 = vmatprep.subr.mxu0 0.0
    %1391 = vmatpush1.msra.mxu0 0.0
    %1392 = vmatprep.subr.mxu0 0.0
    %1393 = vmatpush1.msra.mxu0 0.0
    %1394 = vmatprep.subr.mxu0 0.0
    %1395 = vmatpush1.msra.mxu0 0.0
    %1396 = vmatprep.subr.mxu0 0.0
    %1397 = vmatpush1.msra.mxu0 0.0
    %1398 = vmatprep.subr.mxu0 0.0
    %1399 = vmatpush1.msra.mxu0 0.0
    %1400 = vmatprep.subr.mxu0 0.0
    %1401 = vmatpush1.msra.mxu0 0.0
    %1402 = vmatprep.subr.mxu0 0.0
    %1403 = vmatpush1.msra.mxu0 0.0
    %1404 = vmatprep.subr.mxu0 0.0
    %1405 = vmatpush1.msra.mxu0 0.0
    %1406 = vmatprep.subr.mxu0 0.0
    %1407 = vmatpush1.msra.mxu0 0.0
    %1408 = vmatprep.subr.mxu0 0.0
    %1409 = vmatpush1.msra.mxu0 0.0
    %1410 = vmatprep.subr.mxu0 0.0
    %1411 = vmatpush1.msra.mxu0 0.0
    %1412 = vmatprep.mubr.f32.mxu0 0.0
    %1413 = vmatmul.mubr.f32.gmra.mrb[0].mxu0 %v1346
    %v1414 = vpop.f32.mrb[0].mxu0
    %v1415 = vadd.f32 0.0, %v1414
    %v1416 = vpop.f32.mrb[0].mxu0
    %1417 = vdwg.mxu0
    %1420 = vrot.lane.b32.xlu0 %v1339, 16
    %v1421 = vpop.permute.xlu0 %1420
    %1422 = vrot.lane.b32.xlu0 %v1415, 16
    %v1423 = vpop.permute.xlu0 %1422
    %vm1426 = vcmask 195712
    %1427 = vst.msk [vmem:[#allocation2] sm:$0xff] %vm1426, %v1421
    %1428 = vst.msk [vmem:[#allocation2 + $0x8] sm:$0xff] %vm1426, %v1423
    %1429 = vrot.lane.b32.xlu0 %v384, 104
    %v1430 = vpop.permute.xlu0 %1429
    %1431 = vrot.lane.b32.xlu0 %v378, 72
    %v1432 = vpop.permute.xlu0 %1431
    %v1433 = vsel %vm389, %v1430, 0
    %v1435 = vsel %vm389, %v1432, 0
    %1437 = vmatprep.subr.mxu0 0.0
    %1438 = vmatpush1.xpose.msra.mxu0 %v1435
    %1439 = vmatprep.subr.mxu0 0.0
    %1440 = vmatpush1.xpose.msra.mxu0 0.0
    %1441 = vmatprep.subr.mxu0 0.0
    %1442 = vmatpush1.xpose.msra.mxu0 0.0
    %1443 = vmatprep.subr.mxu0 0.0
    %1444 = vmatpush1.xpose.msra.mxu0 0.0
    %1445 = vmatprep.subr.mxu0 0.0
    %1446 = vmatpush1.xpose.msra.mxu0 0.0
    %1447 = vmatprep.subr.mxu0 0.0
    %1448 = vmatpush1.xpose.msra.mxu0 0.0
    %1449 = vmatprep.subr.mxu0 0.0
    %1450 = vmatpush1.xpose.msra.mxu0 0.0
    %1451 = vmatprep.subr.mxu0 0.0
    %1452 = vmatpush1.xpose.msra.mxu0 0.0
    %1453 = vmatprep.subr.mxu0 0.0
    %1454 = vmatpush1.xpose.msra.mxu0 0.0
    %1455 = vmatprep.subr.mxu0 0.0
    %1456 = vmatpush1.xpose.msra.mxu0 0.0
    %1457 = vmatprep.subr.mxu0 0.0
    %1458 = vmatpush1.xpose.msra.mxu0 0.0
    %1459 = vmatprep.subr.mxu0 0.0
    %1460 = vmatpush1.xpose.msra.mxu0 0.0
    %1461 = vmatprep.subr.mxu0 0.0
    %1462 = vmatpush1.xpose.msra.mxu0 0.0
    %1463 = vmatprep.subr.mxu0 0.0
    %1464 = vmatpush1.xpose.msra.mxu0 0.0
    %1465 = vmatprep.subr.mxu0 0.0
    %1466 = vmatpush1.xpose.msra.mxu0 0.0
    %1467 = vmatprep.subr.mxu0 0.0
    %1468 = vmatpush1.xpose.msra.mxu0 0.0
    %1469 = vmatprep.subr.mxu0 0.0
    %1470 = vmatpush1.xpose.msra.mxu0 0.0
    %1471 = vmatprep.subr.mxu0 0.0
    %1472 = vmatpush1.xpose.msra.mxu0 0.0
    %1473 = vmatprep.subr.mxu0 0.0
    %1474 = vmatpush1.xpose.msra.mxu0 0.0
    %1475 = vmatprep.subr.mxu0 0.0
    %1476 = vmatpush1.xpose.msra.mxu0 0.0
    %1477 = vmatprep.subr.mxu0 0.0
    %1478 = vmatpush1.xpose.msra.mxu0 0.0
    %1479 = vmatprep.subr.mxu0 0.0
    %1480 = vmatpush1.xpose.msra.mxu0 0.0
    %1481 = vmatprep.subr.mxu0 0.0
    %1482 = vmatpush1.xpose.msra.mxu0 0.0
    %1483 = vmatprep.subr.mxu0 0.0
    %1484 = vmatpush1.xpose.msra.mxu0 0.0
    %1485 = vmatprep.subr.mxu0 0.0
    %1486 = vmatpush1.xpose.msra.mxu0 0.0
    %1487 = vmatprep.subr.mxu0 0.0
    %1488 = vmatpush1.xpose.msra.mxu0 0.0
    %1489 = vmatprep.subr.mxu0 0.0
    %1490 = vmatpush1.xpose.msra.mxu0 0.0
    %1491 = vmatprep.subr.mxu0 0.0
    %1492 = vmatpush1.xpose.msra.mxu0 0.0
    %1493 = vmatprep.subr.mxu0 0.0
    %1494 = vmatpush1.xpose.msra.mxu0 0.0
    %1495 = vmatprep.subr.mxu0 0.0
    %1496 = vmatpush1.xpose.msra.mxu0 0.0
    %1497 = vmatprep.subr.mxu0 0.0
    %1498 = vmatpush1.xpose.msra.mxu0 0.0
    %1499 = vmatprep.subr.mxu0 0.0
    %1500 = vmatpush1.xpose.msra.mxu0 0.0
    %1501 = vmatprep.mubr.f32.mxu0 0.0
    %1502 = vmatmul.mubr.f32.gmra.mrb[0].mxu0 %v1433
    %v1503 = vpop.f32.mrb[0].mxu0
    %v1504 = vadd.f32 0.0, %v1503
    %v1505 = vpop.f32.mrb[0].mxu0
    %1506 = vdwg.mxu0
    %1507 = vrot.lane.b32.xlu0 %v385, 104
    %v1508 = vpop.permute.xlu0 %1507
    %1509 = vrot.lane.b32.xlu0 %v381, 72
    %v1510 = vpop.permute.xlu0 %1509
    %v1511 = vsel %vm389, %v1508, 0
    %v1513 = vsel %vm389, %v1510, 0
    %1515 = vmatprep.subr.mxu0 0.0
    %1516 = vmatpush1.xpose.msra.mxu0 %v1513
    %1517 = vmatprep.subr.mxu0 0.0
    %1518 = vmatpush1.xpose.msra.mxu0 0.0
    %1519 = vmatprep.subr.mxu0 0.0
    %1520 = vmatpush1.xpose.msra.mxu0 0.0
    %1521 = vmatprep.subr.mxu0 0.0
    %1522 = vmatpush1.xpose.msra.mxu0 0.0
    %1523 = vmatprep.subr.mxu0 0.0
    %1524 = vmatpush1.xpose.msra.mxu0 0.0
    %1525 = vmatprep.subr.mxu0 0.0
    %1526 = vmatpush1.xpose.msra.mxu0 0.0
    %1527 = vmatprep.subr.mxu0 0.0
    %1528 = vmatpush1.xpose.msra.mxu0 0.0
    %1529 = vmatprep.subr.mxu0 0.0
    %1530 = vmatpush1.xpose.msra.mxu0 0.0
    %1531 = vmatprep.subr.mxu0 0.0
    %1532 = vmatpush1.xpose.msra.mxu0 0.0
    %1533 = vmatprep.subr.mxu0 0.0
    %1534 = vmatpush1.xpose.msra.mxu0 0.0
    %1535 = vmatprep.subr.mxu0 0.0
    %1536 = vmatpush1.xpose.msra.mxu0 0.0
    %1537 = vmatprep.subr.mxu0 0.0
    %1538 = vmatpush1.xpose.msra.mxu0 0.0
    %1539 = vmatprep.subr.mxu0 0.0
    %1540 = vmatpush1.xpose.msra.mxu0 0.0
    %1541 = vmatprep.subr.mxu0 0.0
    %1542 = vmatpush1.xpose.msra.mxu0 0.0
    %1543 = vmatprep.subr.mxu0 0.0
    %1544 = vmatpush1.xpose.msra.mxu0 0.0
    %1545 = vmatprep.subr.mxu0 0.0
    %1546 = vmatpush1.xpose.msra.mxu0 0.0
    %1547 = vmatprep.subr.mxu0 0.0
    %1548 = vmatpush1.xpose.msra.mxu0 0.0
    %1549 = vmatprep.subr.mxu0 0.0
    %1550 = vmatpush1.xpose.msra.mxu0 0.0
    %1551 = vmatprep.subr.mxu0 0.0
    %1552 = vmatpush1.xpose.msra.mxu0 0.0
    %1553 = vmatprep.subr.mxu0 0.0
    %1554 = vmatpush1.xpose.msra.mxu0 0.0
    %1555 = vmatprep.subr.mxu0 0.0
    %1556 = vmatpush1.xpose.msra.mxu0 0.0
    %1557 = vmatprep.subr.mxu0 0.0
    %1558 = vmatpush1.xpose.msra.mxu0 0.0
    %1559 = vmatprep.subr.mxu0 0.0
    %1560 = vmatpush1.xpose.msra.mxu0 0.0
    %1561 = vmatprep.subr.mxu0 0.0
    %1562 = vmatpush1.xpose.msra.mxu0 0.0
    %1563 = vmatprep.subr.mxu0 0.0
    %1564 = vmatpush1.xpose.msra.mxu0 0.0
    %1565 = vmatprep.subr.mxu0 0.0
    %1566 = vmatpush1.xpose.msra.mxu0 0.0
    %1567 = vmatprep.subr.mxu0 0.0
    %1568 = vmatpush1.xpose.msra.mxu0 0.0
    %1569 = vmatprep.subr.mxu0 0.0
    %1570 = vmatpush1.xpose.msra.mxu0 0.0
    %1571 = vmatprep.subr.mxu0 0.0
    %1572 = vmatpush1.xpose.msra.mxu0 0.0
    %1573 = vmatprep.subr.mxu0 0.0
    %1574 = vmatpush1.xpose.msra.mxu0 0.0
    %1575 = vmatprep.subr.mxu0 0.0
    %1576 = vmatpush1.xpose.msra.mxu0 0.0
    %1577 = vmatprep.subr.mxu0 0.0
    %1578 = vmatpush1.xpose.msra.mxu0 0.0
    %1579 = vmatprep.mubr.f32.mxu0 0.0
    %1580 = vmatmul.mubr.f32.gmra.mrb[0].mxu0 %v1511
    %v1581 = vpop.f32.mrb[0].mxu0
    %v1582 = vadd.f32 0.0, %v1581
    %v1583 = vpop.f32.mrb[0].mxu0
    %1584 = vdwg.mxu0
    %v1585 = vmul.f32 %v1504, %v546
    %v1586 = vmul.f32 %v1582, %v550
    %v1587 = vsel %vm389, %v1585, -inf
    %1588 = vmax.xlane.f32.xlu0 %v1587
    %v1589 = vpop.xlane.xlu0 %1588
    %v1590 = vsel %vm389, %v1586, -inf
    %1591 = vmax.xlane.f32.xlu0 %v1590
    %v1592 = vpop.xlane.xlu0 %1591
    %v1593 = vsub.f32 %v1585, %v1589
    %v1594 = vsub.f32 %v1586, %v1592
    %v1595 = vmul.f32 %v1593, 1.442695
    %v1596 = vpow.pop %v1595
    %v1597 = vmul.f32 %v1594, 1.442695
    %v1598 = vpow.pop %v1597
    %v1599 = vmul.f32 %v1596, %v546
    %v1600 = vmul.f32 %v1598, %v550
    %v1601 = vsel %vm389, %v1599, 0.0
    %1602 = vadd.xlane.f32.xlu0 %v1601
    %v1603 = vpop.xlane.xlu0 %1602
    %v1604 = vsel %vm389, %v1600, 0.0
    %1605 = vadd.xlane.f32.xlu0 %v1604
    %v1606 = vpop.xlane.xlu0 %1605
    %v1607 = vadd.f32 %v1603, 1e-13
    %v1608 = vadd.f32 %v1606, 1e-13
    %v1609 = vrcp.pop %v1607
    %v1610 = vrcp.pop %v1608
    %v1611 = vmul.f32 %v1599, %v1609
    %v1612 = vmul.f32 %v1600, %v1610
    %1613 = vrot.lane.b32.xlu0 %v378, 40
    %v1614 = vpop.permute.xlu0 %1613
    %v1617 = vsel %vm389, %v1611, 0
    %1619 = vmatprep.subr.mxu0 0.0
    %1620 = vmatpush1.msra.mxu0 %v1614
    %1621 = vmatprep.subr.mxu0 0.0
    %1622 = vmatpush1.msra.mxu0 0.0
    %1623 = vmatprep.subr.mxu0 0.0
    %1624 = vmatpush1.msra.mxu0 0.0
    %1625 = vmatprep.subr.mxu0 0.0
    %1626 = vmatpush1.msra.mxu0 0.0
    %1627 = vmatprep.subr.mxu0 0.0
    %1628 = vmatpush1.msra.mxu0 0.0
    %1629 = vmatprep.subr.mxu0 0.0
    %1630 = vmatpush1.msra.mxu0 0.0
    %1631 = vmatprep.subr.mxu0 0.0
    %1632 = vmatpush1.msra.mxu0 0.0
    %1633 = vmatprep.subr.mxu0 0.0
    %1634 = vmatpush1.msra.mxu0 0.0
    %1635 = vmatprep.subr.mxu0 0.0
    %1636 = vmatpush1.msra.mxu0 0.0
    %1637 = vmatprep.subr.mxu0 0.0
    %1638 = vmatpush1.msra.mxu0 0.0
    %1639 = vmatprep.subr.mxu0 0.0
    %1640 = vmatpush1.msra.mxu0 0.0
    %1641 = vmatprep.subr.mxu0 0.0
    %1642 = vmatpush1.msra.mxu0 0.0
    %1643 = vmatprep.subr.mxu0 0.0
    %1644 = vmatpush1.msra.mxu0 0.0
    %1645 = vmatprep.subr.mxu0 0.0
    %1646 = vmatpush1.msra.mxu0 0.0
    %1647 = vmatprep.subr.mxu0 0.0
    %1648 = vmatpush1.msra.mxu0 0.0
    %1649 = vmatprep.subr.mxu0 0.0
    %1650 = vmatpush1.msra.mxu0 0.0
    %1651 = vmatprep.subr.mxu0 0.0
    %1652 = vmatpush1.msra.mxu0 0.0
    %1653 = vmatprep.subr.mxu0 0.0
    %1654 = vmatpush1.msra.mxu0 0.0
    %1655 = vmatprep.subr.mxu0 0.0
    %1656 = vmatpush1.msra.mxu0 0.0
    %1657 = vmatprep.subr.mxu0 0.0
    %1658 = vmatpush1.msra.mxu0 0.0
    %1659 = vmatprep.subr.mxu0 0.0
    %1660 = vmatpush1.msra.mxu0 0.0
    %1661 = vmatprep.subr.mxu0 0.0
    %1662 = vmatpush1.msra.mxu0 0.0
    %1663 = vmatprep.subr.mxu0 0.0
    %1664 = vmatpush1.msra.mxu0 0.0
    %1665 = vmatprep.subr.mxu0 0.0
    %1666 = vmatpush1.msra.mxu0 0.0
    %1667 = vmatprep.subr.mxu0 0.0
    %1668 = vmatpush1.msra.mxu0 0.0
    %1669 = vmatprep.subr.mxu0 0.0
    %1670 = vmatpush1.msra.mxu0 0.0
    %1671 = vmatprep.subr.mxu0 0.0
    %1672 = vmatpush1.msra.mxu0 0.0
    %1673 = vmatprep.subr.mxu0 0.0
    %1674 = vmatpush1.msra.mxu0 0.0
    %1675 = vmatprep.subr.mxu0 0.0
    %1676 = vmatpush1.msra.mxu0 0.0
    %1677 = vmatprep.subr.mxu0 0.0
    %1678 = vmatpush1.msra.mxu0 0.0
    %1679 = vmatprep.subr.mxu0 0.0
    %1680 = vmatpush1.msra.mxu0 0.0
    %1681 = vmatprep.subr.mxu0 0.0
    %1682 = vmatpush1.msra.mxu0 0.0
    %1683 = vmatprep.mubr.f32.mxu0 0.0
    %1684 = vmatmul.mubr.f32.gmra.mrb[0].mxu0 %v1617
    %v1685 = vpop.f32.mrb[0].mxu0
    %v1686 = vadd.f32 0.0, %v1685
    %v1687 = vpop.f32.mrb[0].mxu0
    %1688 = vdwg.mxu0
    %1689 = vrot.lane.b32.xlu0 %v381, 40
    %v1690 = vpop.permute.xlu0 %1689
    %v1693 = vsel %vm389, %v1612, 0
    %1695 = vmatprep.subr.mxu0 0.0
    %1696 = vmatpush1.msra.mxu0 %v1690
    %1697 = vmatprep.subr.mxu0 0.0
    %1698 = vmatpush1.msra.mxu0 0.0
    %1699 = vmatprep.subr.mxu0 0.0
    %1700 = vmatpush1.msra.mxu0 0.0
    %1701 = vmatprep.subr.mxu0 0.0
    %1702 = vmatpush1.msra.mxu0 0.0
    %1703 = vmatprep.subr.mxu0 0.0
    %1704 = vmatpush1.msra.mxu0 0.0
    %1705 = vmatprep.subr.mxu0 0.0
    %1706 = vmatpush1.msra.mxu0 0.0
    %1707 = vmatprep.subr.mxu0 0.0
    %1708 = vmatpush1.msra.mxu0 0.0
    %1709 = vmatprep.subr.mxu0 0.0
    %1710 = vmatpush1.msra.mxu0 0.0
    %1711 = vmatprep.subr.mxu0 0.0
    %1712 = vmatpush1.msra.mxu0 0.0
    %1713 = vmatprep.subr.mxu0 0.0
    %1714 = vmatpush1.msra.mxu0 0.0
    %1715 = vmatprep.subr.mxu0 0.0
    %1716 = vmatpush1.msra.mxu0 0.0
    %1717 = vmatprep.subr.mxu0 0.0
    %1718 = vmatpush1.msra.mxu0 0.0
    %1719 = vmatprep.subr.mxu0 0.0
    %1720 = vmatpush1.msra.mxu0 0.0
    %1721 = vmatprep.subr.mxu0 0.0
    %1722 = vmatpush1.msra.mxu0 0.0
    %1723 = vmatprep.subr.mxu0 0.0
    %1724 = vmatpush1.msra.mxu0 0.0
    %1725 = vmatprep.subr.mxu0 0.0
    %1726 = vmatpush1.msra.mxu0 0.0
    %1727 = vmatprep.subr.mxu0 0.0
    %1728 = vmatpush1.msra.mxu0 0.0
    %1729 = vmatprep.subr.mxu0 0.0
    %1730 = vmatpush1.msra.mxu0 0.0
    %1731 = vmatprep.subr.mxu0 0.0
    %1732 = vmatpush1.msra.mxu0 0.0
    %1733 = vmatprep.subr.mxu0 0.0
    %1734 = vmatpush1.msra.mxu0 0.0
    %1735 = vmatprep.subr.mxu0 0.0
    %1736 = vmatpush1.msra.mxu0 0.0
    %1737 = vmatprep.subr.mxu0 0.0
    %1738 = vmatpush1.msra.mxu0 0.0
    %1739 = vmatprep.subr.mxu0 0.0
    %1740 = vmatpush1.msra.mxu0 0.0
    %1741 = vmatprep.subr.mxu0 0.0
    %1742 = vmatpush1.msra.mxu0 0.0
    %1743 = vmatprep.subr.mxu0 0.0
    %1744 = vmatpush1.msra.mxu0 0.0
    %1745 = vmatprep.subr.mxu0 0.0
    %1746 = vmatpush1.msra.mxu0 0.0
    %1747 = vmatprep.subr.mxu0 0.0
    %1748 = vmatpush1.msra.mxu0 0.0
    %1749 = vmatprep.subr.mxu0 0.0
    %1750 = vmatpush1.msra.mxu0 0.0
    %1751 = vmatprep.subr.mxu0 0.0
    %1752 = vmatpush1.msra.mxu0 0.0
    %1753 = vmatprep.subr.mxu0 0.0
    %1754 = vmatpush1.msra.mxu0 0.0
    %1755 = vmatprep.subr.mxu0 0.0
    %1756 = vmatpush1.msra.mxu0 0.0
    %1757 = vmatprep.subr.mxu0 0.0
    %1758 = vmatpush1.msra.mxu0 0.0
    %1759 = vmatprep.mubr.f32.mxu0 0.0
    %1760 = vmatmul.mubr.f32.gmra.mrb[0].mxu0 %v1693
    %v1761 = vpop.f32.mrb[0].mxu0
    %v1762 = vadd.f32 0.0, %v1761
    %v1763 = vpop.f32.mrb[0].mxu0
    %1764 = vdwg.mxu0
    %1767 = vrot.lane.b32.xlu0 %v1686, 24
    %v1768 = vpop.permute.xlu0 %1767
    %1769 = vrot.lane.b32.xlu0 %v1762, 24
    %v1770 = vpop.permute.xlu0 %1769
    %vm1773 = vcmask 261312
    %1774 = vst.msk [vmem:[#allocation2] sm:$0xff] %vm1773, %v1768
    %1775 = vst.msk [vmem:[#allocation2 + $0x8] sm:$0xff] %vm1773, %v1770
    %v1776 = vld [vmem:[#allocation2] sm:$0xff]
    %v1777 = vld [vmem:[#allocation2 + $0x8] sm:$0xff]
    %v1778 = vpack.c.bf16 %v1777, %v1776
    %v1779 = vld [vmem:[%s10] sm:$0xf]
    %v1780 = vld [vmem:[%s10 + $0x4] sm:$0xf]
    %v1781 = vld [vmem:[%s10 + $0x8] sm:$0xf]
    %v1782 = vld [vmem:[%s10 + $0xc] sm:$0xf]
    %v1783 = vld [vmem:[%s11] sm:$0x1]
    %v1785 = vlaneseq
    %v1786 = vshrl.u32 %v1785, 7
    %v1787 = vsub.s32 0, %v1786
    %v1788 = vrot.slane %v1783, %v1787
    %v1794 = vunpack.c.l.b16 %v1779
    %v1795 = vunpack.c.l.b16 %v1780
    %v1796 = vunpack.c.l.b16 %v1781
    %v1797 = vunpack.c.l.b16 %v1782
    %v1798 = vpack.c.b16 %v1795, %v1794
    %v1799 = vpack.c.b16 %v1797, %v1796
    %v1803 = vsel %vm123, %v1778, 0
    %1805 = vmatprep.subr.bf16.mxu0 0
    %1806 = vmatpush1.bf16.msra.mxu0 %v1798
    %1807 = vmatprep.subr.bf16.mxu0 0
    %1808 = vmatpush1.bf16.msra.mxu0 %v1799
    %1809 = vmatprep.subr.bf16.mxu0 0
    %1810 = vmatpush1.bf16.msra.mxu0 0
    %1811 = vmatprep.subr.bf16.mxu0 0
    %1812 = vmatpush1.bf16.msra.mxu0 0
    %1813 = vmatprep.subr.bf16.mxu0 0
    %1814 = vmatpush1.bf16.msra.mxu0 0
    %1815 = vmatprep.subr.bf16.mxu0 0
    %1816 = vmatpush1.bf16.msra.mxu0 0
    %1817 = vmatprep.subr.bf16.mxu0 0
    %1818 = vmatpush1.bf16.msra.mxu0 0
    %1819 = vmatprep.subr.bf16.mxu0 0
    %1820 = vmatpush1.bf16.msra.mxu0 0
    %1821 = vmatprep.subr.bf16.mxu0 0
    %1822 = vmatpush1.bf16.msra.mxu0 0
    %1823 = vmatprep.subr.bf16.mxu0 0
    %1824 = vmatpush1.bf16.msra.mxu0 0
    %1825 = vmatprep.subr.bf16.mxu0 0
    %1826 = vmatpush1.bf16.msra.mxu0 0
    %1827 = vmatprep.subr.bf16.mxu0 0
    %1828 = vmatpush1.bf16.msra.mxu0 0
    %1829 = vmatprep.subr.bf16.mxu0 0
    %1830 = vmatpush1.bf16.msra.mxu0 0
    %1831 = vmatprep.subr.bf16.mxu0 0
    %1832 = vmatpush1.bf16.msra.mxu0 0
    %1833 = vmatprep.subr.bf16.mxu0 0
    %1834 = vmatpush1.bf16.msra.mxu0 0
    %1835 = vmatprep.subr.bf16.mxu0 0
    %1836 = vmatpush1.bf16.msra.mxu0 0
    %1837 = vmatprep.mubr.bf16.mxu0 0
    %1838 = vmatmul.mubr.bf16.gmra.mrb[0].mxu0 %v1803
    %v1839 = vpop.f32.mrb[0].mxu0
    %v1840 = vadd.f32 %v1788, %v1839
    %v1841 = vpop.f32.mrb[0].mxu0
    %v1842 = vpop.f32.mrb[0].mxu0
    %v1843 = vadd.f32 %v1788, %v1842
    %v1844 = vpop.f32.mrb[0].mxu0
    %1845 = vdwg.mxu0
    %v1846 = vadd.f32 %v1840, %v314
    %v1847 = vadd.f32 %v1843, %v315
    %v1848 = vld [vmem:[%s12] sm:$0x1]
    %v1849 = vld [vmem:[%s13] sm:$0x1]
    %v1850 = vsel %vm123, %v1846, 0.0
    %1851 = vadd.xlane.f32.xlu0 %v1850
    %v1852 = vpop.xlane.xlu0 %1851
    %v1853 = vsel %vm123, %v1847, 0.0
    %1854 = vadd.xlane.f32.xlu0 %v1853
    %v1855 = vpop.xlane.xlu0 %1854
    %v1856 = vmul.f32 %v1852, %v265
    %v1857 = vmul.f32 %v1855, %v265
    %v1858 = vsub.f32 %v1846, %v1856
    %v1859 = vsub.f32 %v1847, %v1857
    %v1860 = vmul.f32 %v1858, %v1858
    %v1861 = vmul.f32 %v1859, %v1859
    %v1862 = vsel %vm123, %v1860, 0.0
    %1863 = vadd.xlane.f32.xlu0 %v1862
    %v1864 = vpop.xlane.xlu0 %1863
    %v1865 = vsel %vm123, %v1861, 0.0
    %1866 = vadd.xlane.f32.xlu0 %v1865
    %v1867 = vpop.xlane.xlu0 %1866
    %v1868 = vmul.f32 %v1864, %v265
    %v1869 = vmul.f32 %v1867, %v265
    %v1870 = vrsqrt.pop %v1868
    %v1871 = vmul.f32 %v1868, %v1870
    %vm1872 = vcmp.eq.f32.partialorder %v1868, inf
    %v1873 = vsel %vm1872, %v1868, %v1871
    %vm1874 = vcmp.eq.f32.partialorder %v1868, 0.0
    %v1875 = vand.u32 %v1868, 2147483648
    %v1876 = vsel %vm1874, %v1875, %v1873
    %v1877 = vrsqrt.pop %v1869
    %v1878 = vmul.f32 %v1869, %v1877
    %vm1879 = vcmp.eq.f32.partialorder %v1869, inf
    %v1880 = vsel %vm1879, %v1869, %v1878
    %vm1881 = vcmp.eq.f32.partialorder %v1869, 0.0
    %v1882 = vand.u32 %v1869, 2147483648
    %v1883 = vsel %vm1881, %v1882, %v1880
    %v1885 = vlaneseq
    %v1886 = vshrl.u32 %v1885, 7
    %v1887 = vsub.s32 0, %v1886
    %v1888 = vrot.slane %v1848, %v1887
    %v1890 = vmul.f32 %v1888, %v1858
    %v1891 = vmul.f32 %v1888, %v1859
    %v1892 = vadd.f32 %v1876, 1e-06
    %v1893 = vadd.f32 %v1883, 1e-06
    %v1894 = vrcp.pop %v1892
    %v1895 = vmul.f32 %v1890, %v1894
    %v1896 = vrcp.pop %v1893
    %v1897 = vmul.f32 %v1891, %v1896
    %v1899 = vlaneseq
    %v1900 = vshrl.u32 %v1899, 7
    %v1901 = vsub.s32 0, %v1900
    %v1902 = vrot.slane %v1849, %v1901
    %v1904 = vadd.f32 %v1895, %v1902
    %v1905 = vadd.f32 %v1897, %v1902
    %1906 = vst.msk [vmem:[#allocation8] sm:$0xff] %vm123, %v1904
    %1907 = vst.msk [vmem:[#allocation8 + $0x8] sm:$0xff] %vm123, %v1905
    // Predicated region
    $region66: #{tpu_custom_call.1} parent=1 // pred_check
      _
    $region67: #{tpu_custom_call.1} parent=1 // pred_check_branch
      %1909 = sbr.rel (0) target = $region69
    $region68: #{tpu_custom_call.1} parent=1 // pred_region
      %s1911 = ssub.s32 256, 256
      %1912 = vsyncadd [#allocation5], %s1911
      %s1913 = sshll.u32 [#allocation8], 4
      %s1914 = int_to_ptr.vmem [resolvable:$true] %s1913
      %1919 = dma.vmem_to_hbm [thread:$0]  %s1914, 256, %s14, [#allocation5], 128, 128, 8
    $region69: #{tpu_custom_call.1} parent=1 // pred_fallthru
      _
    // Predicated region
    $region70: #{tpu_custom_call.1} parent=1 // pred_check
      _
    $region71: #{tpu_custom_call.1} parent=1 // pred_check_branch
      %1921 = sbr.rel (0) target = $region73
    $region72: #{tpu_custom_call.1} parent=1 // pred_region
      %1922 = dma.done [#allocation5], 256
    $region73: #{tpu_custom_call.1} parent=1 // pred_fallthru
      _
    %1923 = vsyncpa [#allocation4], 1
    %1924 = vsyncpa [#allocation7], 1
    %1925 = vsyncpa [#allocation5], 1

</llo_original>
